<compile_context>
chip_gen: v7x
topology: tpu7x:2x2x1
jax: 0.10.0
libtpu: 0.0.40
codegen_flags: <defaults>
</compile_context>

<pallas_src>
import math
from functools import partial

import jax
import jax.numpy as jnp
from jax import lax
from jax.experimental import pallas as pl
from jax.experimental.pallas import tpu as pltpu


def attention_layer_kernel(q_ref, k_ref, v_ref,
                           wqt_ref, bq_ref,
                           wkt_ref, bk_ref,
                           wvt_ref, bv_ref,
                           wot_ref, bo_ref,
                           o_ref,
                           k_scratch, v_scratch, head_scratch,
                           *, n_heads, d_keys, d_values):
    mm_dtype = k_scratch.dtype  # dtype fed to the MXU (bf16 by default)

    # ---- Project K/V only once per batch element (first L tile); cache in VMEM scratch.
    #      The L axis is "arbitrary", so the scratch persists across the l grid steps.
    @pl.when(pl.program_id(1) == 0)
    def _():
        k = jnp.dot(k_ref[0], wkt_ref[...], preferred_element_type=jnp.float32) + bk_ref[...]
        v = jnp.dot(v_ref[0], wvt_ref[...], preferred_element_type=jnp.float32) + bv_ref[...]
        k_scratch[...] = k.astype(mm_dtype)
        v_scratch[...] = v.astype(mm_dtype)

    # ---- Q projection for this L tile (1/sqrt(dk) already folded into Wq^T and bq).
    q = (jnp.dot(q_ref[0], wqt_ref[...], preferred_element_type=jnp.float32)
         + bq_ref[...]).astype(mm_dtype)                              # (TL, H*dk)

    k_all = k_scratch[...]                                            # (S, H*dk)
    v_all = v_scratch[...]                                            # (S, H*dv)

    # ---- Per-head attention; head outputs staged into one (TL, H*dv) scratch slab.
    for h in range(n_heads):
        qh = q[:, h * d_keys:(h + 1) * d_keys]                        # (TL, dk)
        kh = k_all[:, h * d_keys:(h + 1) * d_keys]                    # (S, dk)
        vh = v_all[:, h * d_values:(h + 1) * d_values]                # (S, dv)

        # scores = qh @ kh^T without materializing a transposed kh (contract last dims).
        scores = lax.dot_general(
            qh, kh, dimension_numbers=(((1,), (1,)), ((), ())),
            preferred_element_type=jnp.float32)                       # (TL, S) f32

        # Softmax in f32; denominator reciprocal on the EUP (approx ~ free slot).
        scores = scores - jnp.max(scores, axis=-1, keepdims=True)
        p = jnp.exp(scores)
        p = p * pl.reciprocal(jnp.sum(p, axis=-1, keepdims=True), approx=True)

        head_out = jnp.dot(p.astype(mm_dtype), vh,
                           preferred_element_type=jnp.float32)        # (TL, dv)
        head_scratch[:, h * d_values:(h + 1) * d_values] = head_out.astype(mm_dtype)

    # ---- Fused output projection: single K = H*dv matmul at full MXU cadence.
    out = jnp.dot(head_scratch[...], wot_ref[...],
                  preferred_element_type=jnp.float32) + bo_ref[...]
    o_ref[0] = out.astype(o_ref.dtype)


def attention_layer(queries, keys, values, params, *, n_heads,
                    compute_dtype=jnp.bfloat16):
    """Pallas wrapper mirroring AttentionLayer.forward (attn_mask=None, eval mode).

    compute_dtype: dtype fed to the MXU matmuls (default bf16; softmax / accumulation
    always stay in f32). Pass jnp.float32 (or None) for a full-precision MXU path.
    """
    B, L, d_model = queries.shape
    _, S, _ = keys.shape
    wq, bq, wk, bk, wv, bv, wo, bo = params
    d_keys = wq.shape[0] // n_heads
    d_values = wv.shape[0] // n_heads
    scale = 1.0 / math.sqrt(d_keys)
    out_dtype = queries.dtype
    act_dtype = jnp.dtype(compute_dtype if compute_dtype is not None else out_dtype)

    # Pre-transpose weights ONCE to (in, out) layout; fold the softmax scale into Wq/bq.
    wqt = wq.T * scale
    wkt, wvt, wot = wk.T, wv.T, wo.T
    bq_s = (bq * scale).astype(jnp.float32)
    bk_f, bv_f, bo_f = (b.astype(jnp.float32) for b in (bk, bv, bo))

    queries_c = queries.astype(act_dtype)
    keys_c = keys.astype(act_dtype)
    values_c = values.astype(act_dtype)
    wqt, wkt, wvt, wot = (w.astype(act_dtype) for w in (wqt, wkt, wvt, wot))

    # ---- Generation-aware VMEM budget and L-tile cap.
    try:
        vmem_cap = int(pltpu.get_tpu_info().vmem_capacity_bytes)
    except Exception:
        vmem_cap = 128 * 2**20
    vmem_budget = int(0.75 * vmem_cap)
    tl_cap = 128 if vmem_cap <= 64 * 2**20 else 256     # v7x (64 MiB) vs v5e/v6e (128 MiB)

    def pick_tl(cap):
        # Largest divisor of L that is a multiple of 8 (or L itself), capped.
        for tl in range(min(cap, L), 0, -1):
            if L % tl == 0 and (tl % 8 == 0 or tl == L):
                return tl
        return L

    TL = pick_tl(tl_cap)

    act_item = act_dtype.itemsize
    out_item = jnp.dtype(out_dtype).itemsize
    hdk, hdv = n_heads * d_keys, n_heads * d_values

    def vmem_estimate(tl):
        io_tiles = 2 * ((tl + 2 * S) * d_model * act_item + tl * d_model * out_item)
        weights = 2 * (d_model * (2 * hdk + hdv) + hdv * d_model) * act_item
        scratch = (S * (hdk + hdv) + tl * hdv) * act_item
        interm = 4 * (tl * hdk + S * (hdk + hdv) + 2 * tl * S + tl * d_model)
        return io_tiles + weights + scratch + interm

    # If the estimate exceeds the budget, shrink TL (don't silently clamp the limit).
    while vmem_estimate(TL) > vmem_budget and TL % 16 == 0:
        TL //= 2
    num_l = L // TL
    vmem_limit = int(min(max(2 * vmem_estimate(TL), 32 * 2**20), vmem_budget))

    kernel = partial(attention_layer_kernel, n_heads=n_heads,
                     d_keys=d_keys, d_values=d_values)

    def const_spec(a):
        return pl.BlockSpec(a.shape, lambda b, l: (0,) * a.ndim)

    out = pl.pallas_call(
        kernel,
        out_shape=jax.ShapeDtypeStruct((B, L, d_model), out_dtype),
        grid_spec=pltpu.PrefetchScalarGridSpec(
            num_scalar_prefetch=0,
            grid=(B, num_l),
            in_specs=[
                pl.BlockSpec((1, TL, d_model), lambda b, l: (b, l, 0)),  # queries tile
                pl.BlockSpec((1, S, d_model), lambda b, l: (b, 0, 0)),   # keys (full S)
                pl.BlockSpec((1, S, d_model), lambda b, l: (b, 0, 0)),   # values (full S)
                const_spec(wqt), const_spec(bq_s),
                const_spec(wkt), const_spec(bk_f),
                const_spec(wvt), const_spec(bv_f),
                const_spec(wot), const_spec(bo_f),
            ],
            out_specs=pl.BlockSpec((1, TL, d_model), lambda b, l: (b, l, 0)),
            scratch_shapes=[
                pltpu.VMEM((S, hdk), act_dtype),    # cached projected K
                pltpu.VMEM((S, hdv), act_dtype),    # cached projected V
                pltpu.VMEM((TL, hdv), act_dtype),   # staged head outputs for fused Wo
            ],
        ),
        compiler_params=pltpu.CompilerParams(
            # b: parallel (megacore); l: arbitrary (K/V scratch computed at l==0 is reused).
            dimension_semantics=("parallel", "arbitrary"),
            vmem_limit_bytes=vmem_limit,
        ),
    )(queries_c, keys_c, values_c, wqt, bq_s, wkt, bk_f, wvt, bv_f, wot, bo_f)
    # FullAttention with output_attention=False returns attn=None.
    return out, None


def reference_forward(queries, keys, values, params, *, n_heads):
    """Pure-JAX reference of AttentionLayer + FullAttention (no mask, eval mode)."""
    wq, bq, wk, bk, wv, bv, wo, bo = params
    B, L, d_model = queries.shape
    _, S, _ = keys.shape
    d_keys = wq.shape[0] // n_heads
    d_values = wv.shape[0] // n_heads

    q = (queries @ wq.T + bq[0]).reshape(B, L, n_heads, d_keys)
    k = (keys @ wk.T + bk[0]).reshape(B, S, n_heads, d_keys)
    v = (values @ wv.T + bv[0]).reshape(B, S, n_heads, d_values)

    scale = 1.0 / math.sqrt(d_keys)
    scores = jnp.einsum("blhe,bshe->bhls", q, k)
    a = jax.nn.softmax(scale * scores, axis=-1)
    out = jnp.einsum("bhls,bshd->blhd", a, v).reshape(B, L, n_heads * d_values)
    return out @ wo.T + bo[0]


if __name__ == "__main__":
    B, L, S = 2, 8, 8
    d_model, n_heads = 32, 4
    d_keys = d_model // n_heads
    d_values = d_model // n_heads

    key = jax.random.PRNGKey(0)
    ks = jax.random.split(key, 11)

    def init_linear(kw, kb, out_f, in_f):
        bound = 1.0 / math.sqrt(in_f)
        w = jax.random.uniform(kw, (out_f, in_f), jnp.float32, -bound, bound)
        b = jax.random.uniform(kb, (1, out_f), jnp.float32, -bound, bound)
        return w, b

    wq, bq = init_linear(ks[0], ks[1], d_keys * n_heads, d_model)
    wk, bk = init_linear(ks[2], ks[3], d_keys * n_heads, d_model)
    wv, bv = init_linear(ks[4], ks[5], d_values * n_heads, d_model)
    wo, bo = init_linear(ks[6], ks[7], d_model, d_values * n_heads)
    params = (wq, bq, wk, bk, wv, bv, wo, bo)

    queries = jax.random.normal(ks[8], (B, L, d_model), jnp.float32)
    keys_in = jax.random.normal(ks[9], (B, S, d_model), jnp.float32)
    values_in = jax.random.normal(ks[10], (B, S, d_model), jnp.float32)

    ref = reference_forward(queries, keys_in, values_in, params, n_heads=n_heads)

    # Default path: bf16 MXU inputs, f32 softmax/accumulation.
    out, attn = attention_layer(queries, keys_in, values_in, params, n_heads=n_heads)
    out = jax.block_until_ready(out)
    assert out.shape == (B, L, d_model)
    assert attn is None
    assert jnp.allclose(out, ref, atol=5e-2, rtol=5e-2), "mismatch vs reference (bf16)"

    # Full-precision MXU path (tolerance loosened slightly for the approx EUP reciprocal).
    out_f32, _ = attention_layer(queries, keys_in, values_in, params,
                                 n_heads=n_heads, compute_dtype=jnp.float32)
    out_f32 = jax.block_until_ready(out_f32)
    assert jnp.allclose(out_f32, ref, atol=2e-3, rtol=2e-3), "mismatch vs reference (f32)"

    # TODO(synk): attention dropout (p=0.1) is treated as eval-mode identity; attn output
    # is None since FullAttention(output_attention=False).
    print("KERNEL_OK")
</pallas_src>

<mosaic_0001>
module attributes {stable_mosaic.version = 11 : i64} {
  func.func @attention_layer_kernel(%arg0: i32, %arg1: i32, %arg2: memref<1x8x32xbf16, #tpu.memory_space<vmem>>, %arg3: memref<1x8x32xbf16, #tpu.memory_space<vmem>>, %arg4: memref<1x8x32xbf16, #tpu.memory_space<vmem>>, %arg5: memref<32x32xbf16, #tpu.memory_space<vmem>>, %arg6: memref<1x32xf32, #tpu.memory_space<vmem>>, %arg7: memref<32x32xbf16, #tpu.memory_space<vmem>>, %arg8: memref<1x32xf32, #tpu.memory_space<vmem>>, %arg9: memref<32x32xbf16, #tpu.memory_space<vmem>>, %arg10: memref<1x32xf32, #tpu.memory_space<vmem>>, %arg11: memref<32x32xbf16, #tpu.memory_space<vmem>>, %arg12: memref<1x32xf32, #tpu.memory_space<vmem>>, %arg13: memref<1x8x32xf32, #tpu.memory_space<vmem>>, %arg14: memref<8x32xbf16, #tpu.memory_space<vmem>>, %arg15: memref<8x32xbf16, #tpu.memory_space<vmem>>, %arg16: memref<8x32xbf16, #tpu.memory_space<vmem>>) attributes {dimension_semantics = [#tpu.dimension_semantics<parallel>, #tpu.dimension_semantics<arbitrary>], iteration_bounds = array<i64: 2, 1>, scalar_prefetch = 0 : i64, scratch_operands = 3 : i64, tpu.core_type = #tpu.core_type<tc>, window_params = [{transform_indices = @transform_0, window_bounds = array<i64: 1, 8, 32>}, {transform_indices = @transform_1, window_bounds = array<i64: 1, 8, 32>}, {transform_indices = @transform_2, window_bounds = array<i64: 1, 8, 32>}, {pipeline_mode = #tpu.pipeline_mode<synchronous>, transform_indices = @transform_3, window_bounds = array<i64: 32, 32>}, {pipeline_mode = #tpu.pipeline_mode<synchronous>, transform_indices = @transform_4, window_bounds = array<i64: 1, 32>}, {pipeline_mode = #tpu.pipeline_mode<synchronous>, transform_indices = @transform_5, window_bounds = array<i64: 32, 32>}, {pipeline_mode = #tpu.pipeline_mode<synchronous>, transform_indices = @transform_6, window_bounds = array<i64: 1, 32>}, {pipeline_mode = #tpu.pipeline_mode<synchronous>, transform_indices = @transform_7, window_bounds = array<i64: 32, 32>}, {pipeline_mode = #tpu.pipeline_mode<synchronous>, transform_indices = @transform_8, window_bounds = array<i64: 1, 32>}, {pipeline_mode = #tpu.pipeline_mode<synchronous>, transform_indices = @transform_9, window_bounds = array<i64: 32, 32>}, {pipeline_mode = #tpu.pipeline_mode<synchronous>, transform_indices = @transform_10, window_bounds = array<i64: 1, 32>}, {transform_indices = @transform_11, window_bounds = array<i64: 1, 8, 32>}]} {
    %c0_i32 = arith.constant 0 : i32
    %0 = arith.cmpi eq, %arg1, %c0_i32 : i32
    %1 = arith.extui %0 : i1 to i32
    %c0_i32_0 = arith.constant 0 : i32
    %2 = arith.cmpi ne, %1, %c0_i32_0 : i32
    scf.if %2 {
      %c0_42 = arith.constant 0 : index
      %c0_43 = arith.constant 0 : index
      %c0_44 = arith.constant 0 : index
      %94 = vector.load %arg3[%c0_42, %c0_43, %c0_44] : memref<1x8x32xbf16, #tpu.memory_space<vmem>>, vector<1x8x32xbf16>
      %95 = vector.shape_cast %94 : vector<1x8x32xbf16> to vector<8x32xbf16>
      %c0_45 = arith.constant 0 : index
      %c0_46 = arith.constant 0 : index
      %96 = vector.load %arg7[%c0_45, %c0_46] : memref<32x32xbf16, #tpu.memory_space<vmem>>, vector<32x32xbf16>
      %cst_47 = arith.constant dense<0.000000e+00> : vector<8x32xf32>
      %97 = tpu.matmul %95, %96, %cst_47 {dimension_numbers = #tpu.dot_dimension_numbers<[1], [0], [0], [1], [0, 0, 1, 1], [], []>} : vector<8x32xbf16>, vector<32x32xbf16>, vector<8x32xf32> -> vector<8x32xf32>
      %c0_48 = arith.constant 0 : index
      %c0_49 = arith.constant 0 : index
      %98 = vector.load %arg8[%c0_48, %c0_49] : memref<1x32xf32, #tpu.memory_space<vmem>>, vector<1x32xf32>
      %99 = vector.broadcast %98 : vector<1x32xf32> to vector<8x32xf32>
      %100 = arith.addf %97, %99 : vector<8x32xf32>
      %c0_50 = arith.constant 0 : index
      %c0_51 = arith.constant 0 : index
      %c0_52 = arith.constant 0 : index
      %101 = vector.load %arg4[%c0_50, %c0_51, %c0_52] : memref<1x8x32xbf16, #tpu.memory_space<vmem>>, vector<1x8x32xbf16>
      %102 = vector.shape_cast %101 : vector<1x8x32xbf16> to vector<8x32xbf16>
      %c0_53 = arith.constant 0 : index
      %c0_54 = arith.constant 0 : index
      %103 = vector.load %arg9[%c0_53, %c0_54] : memref<32x32xbf16, #tpu.memory_space<vmem>>, vector<32x32xbf16>
      %cst_55 = arith.constant dense<0.000000e+00> : vector<8x32xf32>
      %104 = tpu.matmul %102, %103, %cst_55 {dimension_numbers = #tpu.dot_dimension_numbers<[1], [0], [0], [1], [0, 0, 1, 1], [], []>} : vector<8x32xbf16>, vector<32x32xbf16>, vector<8x32xf32> -> vector<8x32xf32>
      %c0_56 = arith.constant 0 : index
      %c0_57 = arith.constant 0 : index
      %105 = vector.load %arg10[%c0_56, %c0_57] : memref<1x32xf32, #tpu.memory_space<vmem>>, vector<1x32xf32>
      %106 = vector.broadcast %105 : vector<1x32xf32> to vector<8x32xf32>
      %107 = arith.addf %104, %106 : vector<8x32xf32>
      %108 = arith.truncf %100 : vector<8x32xf32> to vector<8x32xbf16>
      %c0_58 = arith.constant 0 : index
      %c0_59 = arith.constant 0 : index
      %109 = vector.load %arg14[%c0_58, %c0_59] : memref<8x32xbf16, #tpu.memory_space<vmem>>, vector<8x32xbf16>
      tpu.vector_store %arg14[%c0_58, %c0_59], %108 {strides = array<i32>} : memref<8x32xbf16, #tpu.memory_space<vmem>>, vector<8x32xbf16>,
      %110 = arith.truncf %107 : vector<8x32xf32> to vector<8x32xbf16>
      %c0_60 = arith.constant 0 : index
      %c0_61 = arith.constant 0 : index
      %111 = vector.load %arg15[%c0_60, %c0_61] : memref<8x32xbf16, #tpu.memory_space<vmem>>, vector<8x32xbf16>
      tpu.vector_store %arg15[%c0_60, %c0_61], %110 {strides = array<i32>} : memref<8x32xbf16, #tpu.memory_space<vmem>>, vector<8x32xbf16>,
    } else {
    }
    %c0 = arith.constant 0 : index
    %c0_1 = arith.constant 0 : index
    %c0_2 = arith.constant 0 : index
    %3 = vector.load %arg2[%c0, %c0_1, %c0_2] : memref<1x8x32xbf16, #tpu.memory_space<vmem>>, vector<1x8x32xbf16>
    %4 = vector.shape_cast %3 : vector<1x8x32xbf16> to vector<8x32xbf16>
    %c0_3 = arith.constant 0 : index
    %c0_4 = arith.constant 0 : index
    %5 = vector.load %arg5[%c0_3, %c0_4] : memref<32x32xbf16, #tpu.memory_space<vmem>>, vector<32x32xbf16>
    %cst = arith.constant dense<0.000000e+00> : vector<8x32xf32>
    %6 = tpu.matmul %4, %5, %cst {dimension_numbers = #tpu.dot_dimension_numbers<[1], [0], [0], [1], [0, 0, 1, 1], [], []>} : vector<8x32xbf16>, vector<32x32xbf16>, vector<8x32xf32> -> vector<8x32xf32>
    %c0_5 = arith.constant 0 : index
    %c0_6 = arith.constant 0 : index
    %7 = vector.load %arg6[%c0_5, %c0_6] : memref<1x32xf32, #tpu.memory_space<vmem>>, vector<1x32xf32>
    %8 = vector.broadcast %7 : vector<1x32xf32> to vector<8x32xf32>
    %9 = arith.addf %6, %8 : vector<8x32xf32>
    %10 = arith.truncf %9 : vector<8x32xf32> to vector<8x32xbf16>
    %c0_7 = arith.constant 0 : index
    %c0_8 = arith.constant 0 : index
    %11 = vector.load %arg14[%c0_7, %c0_8] : memref<8x32xbf16, #tpu.memory_space<vmem>>, vector<8x32xbf16>
    %c0_9 = arith.constant 0 : index
    %c0_10 = arith.constant 0 : index
    %12 = vector.load %arg15[%c0_9, %c0_10] : memref<8x32xbf16, #tpu.memory_space<vmem>>, vector<8x32xbf16>
    %13 = vector.extract_strided_slice %10 {offsets = [0, 0], sizes = [8, 8], strides = [1, 1]} : vector<8x32xbf16> to vector<8x8xbf16>
    %14 = vector.extract_strided_slice %11 {offsets = [0, 0], sizes = [8, 8], strides = [1, 1]} : vector<8x32xbf16> to vector<8x8xbf16>
    %15 = vector.extract_strided_slice %12 {offsets = [0, 0], sizes = [8, 8], strides = [1, 1]} : vector<8x32xbf16> to vector<8x8xbf16>
    %cst_11 = arith.constant dense<0.000000e+00> : vector<8x8xf32>
    %16 = tpu.matmul %13, %14, %cst_11 {dimension_numbers = #tpu.dot_dimension_numbers<[1], [1], [0], [0], [0, 0, 1, 0], [], []>} : vector<8x8xbf16>, vector<8x8xbf16>, vector<8x8xf32> -> vector<8x8xf32>
    %cst_12 = arith.constant dense<0xFF800000> : vector<8xf32>
    %17 = vector.multi_reduction <maximumf>, %16, %cst_12 [1] : vector<8x8xf32> to vector<8xf32>
    %18 = vector.shape_cast %17 : vector<8xf32> to vector<8x1xf32>
    %19 = vector.broadcast %18 : vector<8x1xf32> to vector<8x8xf32>
    %20 = arith.subf %16, %19 : vector<8x8xf32>
    %21 = math.exp %20 : vector<8x8xf32>
    %cst_13 = arith.constant dense<0.000000e+00> : vector<8xf32>
    %22 = vector.multi_reduction <add>, %21, %cst_13 [1] : vector<8x8xf32> to vector<8xf32>
    %23 = vector.shape_cast %22 : vector<8xf32> to vector<8x1xf32>
    %24 = tpu.reciprocal %23 {approx = true} : vector<8x1xf32> -> vector<8x1xf32>
    %25 = vector.broadcast %24 : vector<8x1xf32> to vector<8x8xf32>
    %26 = arith.mulf %21, %25 : vector<8x8xf32>
    %27 = arith.truncf %26 : vector<8x8xf32> to vector<8x8xbf16>
    %cst_14 = arith.constant dense<0.000000e+00> : vector<8x8xf32>
    %28 = tpu.matmul %27, %15, %cst_14 {dimension_numbers = #tpu.dot_dimension_numbers<[1], [0], [0], [1], [0, 0, 1, 1], [], []>} : vector<8x8xbf16>, vector<8x8xbf16>, vector<8x8xf32> -> vector<8x8xf32>
    %29 = arith.truncf %28 : vector<8x8xf32> to vector<8x8xbf16>
    %c0_15 = arith.constant 0 : index
    %c0_16 = arith.constant 0 : index
    %30 = vector.load %arg16[%c0_15, %c0_16] : memref<8x32xbf16, #tpu.memory_space<vmem>>, vector<8x8xbf16>
    tpu.vector_store %arg16[%c0_15, %c0_16], %29 {strides = array<i32>} : memref<8x32xbf16, #tpu.memory_space<vmem>>, vector<8x8xbf16>,
    %31 = vector.extract_strided_slice %10 {offsets = [0, 8], sizes = [8, 8], strides = [1, 1]} : vector<8x32xbf16> to vector<8x8xbf16>
    %32 = vector.extract_strided_slice %11 {offsets = [0, 8], sizes = [8, 8], strides = [1, 1]} : vector<8x32xbf16> to vector<8x8xbf16>
    %33 = vector.extract_strided_slice %12 {offsets = [0, 8], sizes = [8, 8], strides = [1, 1]} : vector<8x32xbf16> to vector<8x8xbf16>
    %cst_17 = arith.constant dense<0.000000e+00> : vector<8x8xf32>
    %34 = tpu.matmul %31, %32, %cst_17 {dimension_numbers = #tpu.dot_dimension_numbers<[1], [1], [0], [0], [0, 0, 1, 0], [], []>} : vector<8x8xbf16>, vector<8x8xbf16>, vector<8x8xf32> -> vector<8x8xf32>
    %cst_18 = arith.constant dense<0xFF800000> : vector<8xf32>
    %35 = vector.multi_reduction <maximumf>, %34, %cst_18 [1] : vector<8x8xf32> to vector<8xf32>
    %36 = vector.shape_cast %35 : vector<8xf32> to vector<8x1xf32>
    %37 = vector.broadcast %36 : vector<8x1xf32> to vector<8x8xf32>
    %38 = arith.subf %34, %37 : vector<8x8xf32>
    %39 = math.exp %38 : vector<8x8xf32>
    %cst_19 = arith.constant dense<0.000000e+00> : vector<8xf32>
    %40 = vector.multi_reduction <add>, %39, %cst_19 [1] : vector<8x8xf32> to vector<8xf32>
    %41 = vector.shape_cast %40 : vector<8xf32> to vector<8x1xf32>
    %42 = tpu.reciprocal %41 {approx = true} : vector<8x1xf32> -> vector<8x1xf32>
    %43 = vector.broadcast %42 : vector<8x1xf32> to vector<8x8xf32>
    %44 = arith.mulf %39, %43 : vector<8x8xf32>
    %45 = arith.truncf %44 : vector<8x8xf32> to vector<8x8xbf16>
    %cst_20 = arith.constant dense<0.000000e+00> : vector<8x8xf32>
    %46 = tpu.matmul %45, %33, %cst_20 {dimension_numbers = #tpu.dot_dimension_numbers<[1], [0], [0], [1], [0, 0, 1, 1], [], []>} : vector<8x8xbf16>, vector<8x8xbf16>, vector<8x8xf32> -> vector<8x8xf32>
    %47 = arith.truncf %46 : vector<8x8xf32> to vector<8x8xbf16>
    %c0_21 = arith.constant 0 : index
    %c8 = arith.constant 8 : index
    %48 = vector.load %arg16[%c0_21, %c8] : memref<8x32xbf16, #tpu.memory_space<vmem>>, vector<8x8xbf16>
    tpu.vector_store %arg16[%c0_21, %c8], %47 {strides = array<i32>} : memref<8x32xbf16, #tpu.memory_space<vmem>>, vector<8x8xbf16>,
    %49 = vector.extract_strided_slice %10 {offsets = [0, 16], sizes = [8, 8], strides = [1, 1]} : vector<8x32xbf16> to vector<8x8xbf16>
    %50 = vector.extract_strided_slice %11 {offsets = [0, 16], sizes = [8, 8], strides = [1, 1]} : vector<8x32xbf16> to vector<8x8xbf16>
    %51 = vector.extract_strided_slice %12 {offsets = [0, 16], sizes = [8, 8], strides = [1, 1]} : vector<8x32xbf16> to vector<8x8xbf16>
    %cst_22 = arith.constant dense<0.000000e+00> : vector<8x8xf32>
    %52 = tpu.matmul %49, %50, %cst_22 {dimension_numbers = #tpu.dot_dimension_numbers<[1], [1], [0], [0], [0, 0, 1, 0], [], []>} : vector<8x8xbf16>, vector<8x8xbf16>, vector<8x8xf32> -> vector<8x8xf32>
    %cst_23 = arith.constant dense<0xFF800000> : vector<8xf32>
    %53 = vector.multi_reduction <maximumf>, %52, %cst_23 [1] : vector<8x8xf32> to vector<8xf32>
    %54 = vector.shape_cast %53 : vector<8xf32> to vector<8x1xf32>
    %55 = vector.broadcast %54 : vector<8x1xf32> to vector<8x8xf32>
    %56 = arith.subf %52, %55 : vector<8x8xf32>
    %57 = math.exp %56 : vector<8x8xf32>
    %cst_24 = arith.constant dense<0.000000e+00> : vector<8xf32>
    %58 = vector.multi_reduction <add>, %57, %cst_24 [1] : vector<8x8xf32> to vector<8xf32>
    %59 = vector.shape_cast %58 : vector<8xf32> to vector<8x1xf32>
    %60 = tpu.reciprocal %59 {approx = true} : vector<8x1xf32> -> vector<8x1xf32>
    %61 = vector.broadcast %60 : vector<8x1xf32> to vector<8x8xf32>
    %62 = arith.mulf %57, %61 : vector<8x8xf32>
    %63 = arith.truncf %62 : vector<8x8xf32> to vector<8x8xbf16>
    %cst_25 = arith.constant dense<0.000000e+00> : vector<8x8xf32>
    %64 = tpu.matmul %63, %51, %cst_25 {dimension_numbers = #tpu.dot_dimension_numbers<[1], [0], [0], [1], [0, 0, 1, 1], [], []>} : vector<8x8xbf16>, vector<8x8xbf16>, vector<8x8xf32> -> vector<8x8xf32>
    %65 = arith.truncf %64 : vector<8x8xf32> to vector<8x8xbf16>
    %c0_26 = arith.constant 0 : index
    %c16 = arith.constant 16 : index
    %66 = vector.load %arg16[%c0_26, %c16] : memref<8x32xbf16, #tpu.memory_space<vmem>>, vector<8x8xbf16>
    tpu.vector_store %arg16[%c0_26, %c16], %65 {strides = array<i32>} : memref<8x32xbf16, #tpu.memory_space<vmem>>, vector<8x8xbf16>,
    %67 = vector.extract_strided_slice %10 {offsets = [0, 24], sizes = [8, 8], strides = [1, 1]} : vector<8x32xbf16> to vector<8x8xbf16>
    %68 = vector.extract_strided_slice %11 {offsets = [0, 24], sizes = [8, 8], strides = [1, 1]} : vector<8x32xbf16> to vector<8x8xbf16>
    %69 = vector.extract_strided_slice %12 {offsets = [0, 24], sizes = [8, 8], strides = [1, 1]} : vector<8x32xbf16> to vector<8x8xbf16>
    %cst_27 = arith.constant dense<0.000000e+00> : vector<8x8xf32>
    %70 = tpu.matmul %67, %68, %cst_27 {dimension_numbers = #tpu.dot_dimension_numbers<[1], [1], [0], [0], [0, 0, 1, 0], [], []>} : vector<8x8xbf16>, vector<8x8xbf16>, vector<8x8xf32> -> vector<8x8xf32>
    %cst_28 = arith.constant dense<0xFF800000> : vector<8xf32>
    %71 = vector.multi_reduction <maximumf>, %70, %cst_28 [1] : vector<8x8xf32> to vector<8xf32>
    %72 = vector.shape_cast %71 : vector<8xf32> to vector<8x1xf32>
    %73 = vector.broadcast %72 : vector<8x1xf32> to vector<8x8xf32>
    %74 = arith.subf %70, %73 : vector<8x8xf32>
    %75 = math.exp %74 : vector<8x8xf32>
    %cst_29 = arith.constant dense<0.000000e+00> : vector<8xf32>
    %76 = vector.multi_reduction <add>, %75, %cst_29 [1] : vector<8x8xf32> to vector<8xf32>
    %77 = vector.shape_cast %76 : vector<8xf32> to vector<8x1xf32>
    %78 = tpu.reciprocal %77 {approx = true} : vector<8x1xf32> -> vector<8x1xf32>
    %79 = vector.broadcast %78 : vector<8x1xf32> to vector<8x8xf32>
    %80 = arith.mulf %75, %79 : vector<8x8xf32>
    %81 = arith.truncf %80 : vector<8x8xf32> to vector<8x8xbf16>
    %cst_30 = arith.constant dense<0.000000e+00> : vector<8x8xf32>
    %82 = tpu.matmul %81, %69, %cst_30 {dimension_numbers = #tpu.dot_dimension_numbers<[1], [0], [0], [1], [0, 0, 1, 1], [], []>} : vector<8x8xbf16>, vector<8x8xbf16>, vector<8x8xf32> -> vector<8x8xf32>
    %83 = arith.truncf %82 : vector<8x8xf32> to vector<8x8xbf16>
    %c0_31 = arith.constant 0 : index
    %c24 = arith.constant 24 : index
    %84 = vector.load %arg16[%c0_31, %c24] : memref<8x32xbf16, #tpu.memory_space<vmem>>, vector<8x8xbf16>
    tpu.vector_store %arg16[%c0_31, %c24], %83 {strides = array<i32>} : memref<8x32xbf16, #tpu.memory_space<vmem>>, vector<8x8xbf16>,
    %c0_32 = arith.constant 0 : index
    %c0_33 = arith.constant 0 : index
    %85 = vector.load %arg16[%c0_32, %c0_33] : memref<8x32xbf16, #tpu.memory_space<vmem>>, vector<8x32xbf16>
    %c0_34 = arith.constant 0 : index
    %c0_35 = arith.constant 0 : index
    %86 = vector.load %arg11[%c0_34, %c0_35] : memref<32x32xbf16, #tpu.memory_space<vmem>>, vector<32x32xbf16>
    %cst_36 = arith.constant dense<0.000000e+00> : vector<8x32xf32>
    %87 = tpu.matmul %85, %86, %cst_36 {dimension_numbers = #tpu.dot_dimension_numbers<[1], [0], [0], [1], [0, 0, 1, 1], [], []>} : vector<8x32xbf16>, vector<32x32xbf16>, vector<8x32xf32> -> vector<8x32xf32>
    %c0_37 = arith.constant 0 : index
    %c0_38 = arith.constant 0 : index
    %88 = vector.load %arg12[%c0_37, %c0_38] : memref<1x32xf32, #tpu.memory_space<vmem>>, vector<1x32xf32>
    %89 = vector.broadcast %88 : vector<1x32xf32> to vector<8x32xf32>
    %90 = arith.addf %87, %89 : vector<8x32xf32>
    %c0_39 = arith.constant 0 : index
    %c0_40 = arith.constant 0 : index
    %c0_41 = arith.constant 0 : index
    %91 = vector.load %arg13[%c0_39, %c0_40, %c0_41] : memref<1x8x32xf32, #tpu.memory_space<vmem>>, vector<1x8x32xf32>
    %92 = vector.shape_cast %91 : vector<1x8x32xf32> to vector<8x32xf32>
    %93 = vector.shape_cast %90 : vector<8x32xf32> to vector<1x8x32xf32>
    tpu.vector_store %arg13[%c0_39, %c0_40, %c0_41], %93 {strides = array<i32>} : memref<1x8x32xf32, #tpu.memory_space<vmem>>, vector<1x8x32xf32>,
    return
  }
  func.func @transform_0(%arg0: i32, %arg1: i32) -> (i32, i32, i32) {
    %c0_i32 = arith.constant 0 : i32
    %c0_i32_0 = arith.constant 0 : i32
    return %arg0, %arg1, %c0_i32 : i32, i32, i32
  }
  func.func @transform_1(%arg0: i32, %arg1: i32) -> (i32, i32, i32) {
    %c0_i32 = arith.constant 0 : i32
    %c0_i32_0 = arith.constant 0 : i32
    %c0_i32_1 = arith.constant 0 : i32
    return %arg0, %c0_i32, %c0_i32_0 : i32, i32, i32
  }
  func.func @transform_2(%arg0: i32, %arg1: i32) -> (i32, i32, i32) {
    %c0_i32 = arith.constant 0 : i32
    %c0_i32_0 = arith.constant 0 : i32
    %c0_i32_1 = arith.constant 0 : i32
    return %arg0, %c0_i32, %c0_i32_0 : i32, i32, i32
  }
  func.func @transform_3(%arg0: i32, %arg1: i32) -> (i32, i32) {
    %c0_i32 = arith.constant 0 : i32
    %c0_i32_0 = arith.constant 0 : i32
    %c0_i32_1 = arith.constant 0 : i32
    return %c0_i32, %c0_i32_0 : i32, i32
  }
  func.func @transform_4(%arg0: i32, %arg1: i32) -> (i32, i32) {
    %c0_i32 = arith.constant 0 : i32
    %c0_i32_0 = arith.constant 0 : i32
    %c0_i32_1 = arith.constant 0 : i32
    return %c0_i32, %c0_i32_0 : i32, i32
  }
  func.func @transform_5(%arg0: i32, %arg1: i32) -> (i32, i32) {
    %c0_i32 = arith.constant 0 : i32
    %c0_i32_0 = arith.constant 0 : i32
    %c0_i32_1 = arith.constant 0 : i32
    return %c0_i32, %c0_i32_0 : i32, i32
  }
  func.func @transform_6(%arg0: i32, %arg1: i32) -> (i32, i32) {
    %c0_i32 = arith.constant 0 : i32
    %c0_i32_0 = arith.constant 0 : i32
    %c0_i32_1 = arith.constant 0 : i32
    return %c0_i32, %c0_i32_0 : i32, i32
  }
  func.func @transform_7(%arg0: i32, %arg1: i32) -> (i32, i32) {
    %c0_i32 = arith.constant 0 : i32
    %c0_i32_0 = arith.constant 0 : i32
    %c0_i32_1 = arith.constant 0 : i32
    return %c0_i32, %c0_i32_0 : i32, i32
  }
  func.func @transform_8(%arg0: i32, %arg1: i32) -> (i32, i32) {
    %c0_i32 = arith.constant 0 : i32
    %c0_i32_0 = arith.constant 0 : i32
    %c0_i32_1 = arith.constant 0 : i32
    return %c0_i32, %c0_i32_0 : i32, i32
  }
  func.func @transform_9(%arg0: i32, %arg1: i32) -> (i32, i32) {
    %c0_i32 = arith.constant 0 : i32
    %c0_i32_0 = arith.constant 0 : i32
    %c0_i32_1 = arith.constant 0 : i32
    return %c0_i32, %c0_i32_0 : i32, i32
  }
  func.func @transform_10(%arg0: i32, %arg1: i32) -> (i32, i32) {
    %c0_i32 = arith.constant 0 : i32
    %c0_i32_0 = arith.constant 0 : i32
    %c0_i32_1 = arith.constant 0 : i32
    return %c0_i32, %c0_i32_0 : i32, i32
  }
  func.func @transform_11(%arg0: i32, %arg1: i32) -> (i32, i32, i32) {
    %c0_i32 = arith.constant 0 : i32
    %c0_i32_0 = arith.constant 0 : i32
    return %arg0, %arg1, %c0_i32 : i32, i32, i32
  }
}

</mosaic_0001>

<llo_original>
// kernel: tpu_custom_call.1
$region0: #{tpu_custom_call.1}
  #allocation0 [shape = 'u32[]', space=smem, size = 0x4, offset = 0x4, fixed_abs, tag = 'smem constant byte address 0x4 - core index']
  #allocation1 [shape = 'u32[144,128]{1,0:T(1,128)}', space=vmem, size = 0x12000, scoped, tag = 'internal scratch']
  #allocation2 [shape = 'bf16[8,32]{1,0:T(8,128)(2,1)}', space=vmem, size = 0x800, scoped, tag = 'scratch operand']
  #allocation3 [shape = 'bf16[8,32]{1,0:T(8,128)(2,1)}', space=vmem, size = 0x800, scoped, tag = 'scratch operand']
  #allocation4 [shape = 'bf16[8,32]{1,0:T(8,128)(2,1)}', space=vmem, size = 0x800, scoped, tag = 'scratch operand']
  %s0 = inlined_call_operand.hbm [shape: bf16[2,8,32], index: 0, kind: input, shape index: {}]
  %s1 = inlined_call_operand.hbm [shape: bf16[2,8,32], index: 1, kind: input, shape index: {}]
  %s2 = inlined_call_operand.hbm [shape: bf16[2,8,32], index: 2, kind: input, shape index: {}]
  %s3 = inlined_call_operand.hbm [shape: bf16[32,32], index: 3, kind: input, shape index: {}]
  %s4 = inlined_call_operand.vmem [shape: f32[1,32], index: 4, kind: input, shape index: {}]
  %s5 = inlined_call_operand.vmem [shape: bf16[32,32], index: 5, kind: input, shape index: {}]
  %s6 = inlined_call_operand.vmem [shape: f32[1,32], index: 6, kind: input, shape index: {}]
  %s7 = inlined_call_operand.hbm [shape: bf16[32,32], index: 7, kind: input, shape index: {}]
  %s8 = inlined_call_operand.hbm [shape: f32[1,32], index: 8, kind: input, shape index: {}]
  %s9 = inlined_call_operand.vmem [shape: bf16[32,32], index: 9, kind: input, shape index: {}]
  %s10 = inlined_call_operand.vmem [shape: f32[1,32], index: 10, kind: input, shape index: {}]
  %s11 = inlined_call_operand.hbm [shape: f32[2,8,32], index: 11, kind: output, shape index: {}]
  %s12 = sld [smem:[#allocation0]]
  $region105: #{tpu_custom_call.1} parent=0
    _
  %s14 = ssub.s32 1, %s12
  %s15 = scalar_select 0, %s14, %s12
  $region1: #{tpu_custom_call.1} parent=0
    #allocation5 [shape = 'u8[4096]{0}', space=vmem, size = 0x1000, scoped, tag = 'input window, operand 0']
    #allocation6 [shape = 's32[2]{0}', space=sflag, size = 0x8, scoped, tag = 'scoped memory for tpu_custom_call.1']
    #allocation7 [shape = 's32[2]{0}', space=sflag, size = 0x8, scoped, tag = 'scoped memory for tpu_custom_call.1']
    #allocation8 [shape = 'u8[4096]{0}', space=vmem, size = 0x1000, scoped, tag = 'input window, operand 1']
    #allocation9 [shape = 's32[2]{0}', space=sflag, size = 0x8, scoped, tag = 'scoped memory for tpu_custom_call.1']
    #allocation10 [shape = 'u8[4096]{0}', space=vmem, size = 0x1000, scoped, tag = 'input window, operand 2']
    #allocation11 [shape = 'u8[8192]{0}', space=vmem, size = 0x2000, scoped, tag = 'input window, operand 3, single buffered']
    #allocation12 [shape = 's32[1]{0}', space=sflag, size = 0x4, scoped, tag = 'scoped memory for tpu_custom_call.1']
    #allocation13 [shape = 'u8[8192]{0}', space=vmem, size = 0x2000, scoped, tag = 'input window, operand 7, single buffered']
    #allocation14 [shape = 'u8[512]{0}', space=vmem, size = 0x400, scoped, tag = 'input window, operand 8, single buffered']
    #allocation15 [shape = 's32[1]{0}', space=sflag, size = 0x4, scoped, tag = 'scoped memory for tpu_custom_call.1']
    #allocation16 [shape = 'u8[8192]{0}', space=vmem, size = 0x2000, scoped, tag = 'output window, operand 0']
    %16 = vsyncpa [#allocation6], 0
    %s17 = scalar_lea.sflag [#allocation6], 1
    %18 = vsyncpa %s17, 0
    %19 = vsyncpa [#allocation9], 0
    %s20 = scalar_lea.sflag [#allocation9], 1
    %21 = vsyncpa %s20, 0
    %22 = vsyncpa [#allocation12], 0
    %23 = vsyncpa [#allocation15], 0
    %24 = vsyncpa [#allocation7], 0
    %s25 = scalar_lea.sflag [#allocation7], 1
    %26 = vsyncpa %s25, 0
    loop: start=0, step=1, limit=4
    $region2: #{tpu_custom_call.1} parent=1 // loop_pre_header
      _
    $region3: #{tpu_custom_call.1} parent=1 // loop_header
      %s28 = sphi 0, %s32
      %p29 = scmp.ge.s32.totalorder %s28, 4
      %s35 = sphi 0, %s47
      %s36 = sphi 0, %s43
      %s37 = sphi 0, %s35
      %s38 = sphi 0, %s36
      %s39 = sphi 0, %s37
      %s40 = sphi 0, %s38
      %s52 = sphi 0, %s54
      %s55 = sphi 0, %s52
      %s56 = sphi 0, %s55
      %s72 = sphi 0, %s56
      %s78 = sphi 0, %s80
      %s81 = sphi 0, %s78
      %s82 = sphi 0, %s81
      %s98 = sphi 0, %s82
      %s104 = sphi 0, %s106
      %s107 = sphi 0, %s104
      %s108 = sphi 0, %s107
      %s124 = sphi 0, %s108
      %s128 = sphi 0, %s128
      %s130 = sphi 0, %s128
      %s131 = sphi 0, %s130
      %s145 = sphi 0, %s131
      %s149 = sphi 0, %s149
      %s151 = sphi 0, %s149
      %s152 = sphi 0, %s151
      %s166 = sphi 0, %s152
      %s170 = sphi 0, %s170
      %s172 = sphi 0, %s170
      %s173 = sphi 0, %s172
      %s187 = sphi 0, %s173
      %s191 = sphi 0, %s191
      %s193 = sphi 0, %s191
      %s194 = sphi 0, %s193
      %s208 = sphi 0, %s194
      %s212 = sphi 0, %s212
      %s214 = sphi 0, %s212
      %s215 = sphi 0, %s214
      %s229 = sphi 0, %s215
      %s233 = sphi 0, %s233
      %s235 = sphi 0, %s233
      %s236 = sphi 0, %s235
      %s250 = sphi 0, %s236
      %s254 = sphi 0, %s254
      %s256 = sphi 0, %s254
      %s257 = sphi 0, %s256
      %s271 = sphi 0, %s257
      %s275 = sphi 0, %s275
      %s277 = sphi 0, %s275
      %s278 = sphi 0, %s277
      %s292 = sphi 0, %s278
      %s300 = sphi 0, %s302
      %s303 = sphi 0, %s300
      %s304 = sphi 0, %s303
      %s320 = sphi 0, %s304
    $region4: #{tpu_custom_call.1} parent=1 // loop_header_branch
      %31 = sbr.rel (%p29) target = $region8
    $region5: #{tpu_custom_call.1} parent=1 // loop_body
      %s33 = ssub.s32 %s28, 1
      %s34 = ssub.s32 %s28, 2
      %s41 = sadd.s32 1, %s36
      %p42 = scmp.ge.s32.totalorder %s41, 1
      %s43 = scalar_select %p42, 0, %s41
      %s44 = sadd.s32 1, %s35
      %s45 = scalar_select %p42, %s44, %s35
      %p46 = scmp.ge.s32.totalorder %s45, 2
      %s47 = scalar_select %p46, 0, %s45
      %s48 = ssub.s32 %s35, %s47
      %s49 = ssub.s32 %s36, %s43
      %s50 = sor.u32 %s48, %s49
      %p51 = scmp.eq.s32.totalorder %s50, 0
      %s53 = sadd.s32 %s52, 1
      %s54 = scalar_select %p51, %s52, %s53
      %p57 = pneg %p51
      %p58 = scmp.eq.s32.totalorder %s28, 1
      %p59 = por %p57, %p58
      %p60 = scmp.ne.s32.totalorder %s52, %s55
      %p61 = scmp.eq.s32.totalorder %s28, 0
      %p62 = por %p60, %p61
      %p63 = scmp.ne.s32.totalorder %s52, %s55
      %p64 = scmp.eq.s32.totalorder %s33, 1
      %p65 = por %p63, %p64
      %p66 = scmp.ne.s32.totalorder %s55, %s56
      %p67 = scmp.eq.s32.totalorder %s33, 0
      %p68 = por %p66, %p67
      %p69 = scmp.ne.s32.totalorder %s55, %s56
      %p70 = scmp.eq.s32.totalorder %s34, 1
      %p71 = por %p69, %p70
      %p73 = scmp.ne.s32.totalorder %s56, %s72
      %p74 = scmp.eq.s32.totalorder %s34, 0
      %p75 = por %p73, %p74
      %s76 = ssub.s32 %s35, %s47
      %p77 = scmp.eq.s32.totalorder %s76, 0
      %s79 = sadd.s32 %s78, 1
      %s80 = scalar_select %p77, %s78, %s79
      %p83 = pneg %p77
      %p84 = scmp.eq.s32.totalorder %s28, 1
      %p85 = por %p83, %p84
      %p86 = scmp.ne.s32.totalorder %s78, %s81
      %p87 = scmp.eq.s32.totalorder %s28, 0
      %p88 = por %p86, %p87
      %p89 = scmp.ne.s32.totalorder %s78, %s81
      %p90 = scmp.eq.s32.totalorder %s33, 1
      %p91 = por %p89, %p90
      %p92 = scmp.ne.s32.totalorder %s81, %s82
      %p93 = scmp.eq.s32.totalorder %s33, 0
      %p94 = por %p92, %p93
      %p95 = scmp.ne.s32.totalorder %s81, %s82
      %p96 = scmp.eq.s32.totalorder %s34, 1
      %p97 = por %p95, %p96
      %p99 = scmp.ne.s32.totalorder %s82, %s98
      %p100 = scmp.eq.s32.totalorder %s34, 0
      %p101 = por %p99, %p100
      %s102 = ssub.s32 %s35, %s47
      %p103 = scmp.eq.s32.totalorder %s102, 0
      %s105 = sadd.s32 %s104, 1
      %s106 = scalar_select %p103, %s104, %s105
      %p109 = pneg %p103
      %p110 = scmp.eq.s32.totalorder %s28, 1
      %p111 = por %p109, %p110
      %p112 = scmp.ne.s32.totalorder %s104, %s107
      %p113 = scmp.eq.s32.totalorder %s28, 0
      %p114 = por %p112, %p113
      %p115 = scmp.ne.s32.totalorder %s104, %s107
      %p116 = scmp.eq.s32.totalorder %s33, 1
      %p117 = por %p115, %p116
      %p118 = scmp.ne.s32.totalorder %s107, %s108
      %p119 = scmp.eq.s32.totalorder %s33, 0
      %p120 = por %p118, %p119
      %p121 = scmp.ne.s32.totalorder %s107, %s108
      %p122 = scmp.eq.s32.totalorder %s34, 1
      %p123 = por %p121, %p122
      %p125 = scmp.ne.s32.totalorder %s108, %s124
      %p126 = scmp.eq.s32.totalorder %s34, 0
      %p127 = por %p125, %p126
      %s129 = sadd.s32 %s128, 1
      %p132 = scmp.eq.s32.totalorder %s28, 1
      %p133 = scmp.ne.s32.totalorder %s128, %s130
      %p134 = scmp.eq.s32.totalorder %s28, 0
      %p135 = por %p133, %p134
      %p136 = scmp.ne.s32.totalorder %s128, %s130
      %p137 = scmp.eq.s32.totalorder %s33, 1
      %p138 = por %p136, %p137
      %p139 = scmp.ne.s32.totalorder %s130, %s131
      %p140 = scmp.eq.s32.totalorder %s33, 0
      %p141 = por %p139, %p140
      %p142 = scmp.ne.s32.totalorder %s130, %s131
      %p143 = scmp.eq.s32.totalorder %s34, 1
      %p144 = por %p142, %p143
      %p146 = scmp.ne.s32.totalorder %s131, %s145
      %p147 = scmp.eq.s32.totalorder %s34, 0
      %p148 = por %p146, %p147
      %s150 = sadd.s32 %s149, 1
      %p153 = scmp.eq.s32.totalorder %s28, 1
      %p154 = scmp.ne.s32.totalorder %s149, %s151
      %p155 = scmp.eq.s32.totalorder %s28, 0
      %p156 = por %p154, %p155
      %p157 = scmp.ne.s32.totalorder %s149, %s151
      %p158 = scmp.eq.s32.totalorder %s33, 1
      %p159 = por %p157, %p158
      %p160 = scmp.ne.s32.totalorder %s151, %s152
      %p161 = scmp.eq.s32.totalorder %s33, 0
      %p162 = por %p160, %p161
      %p163 = scmp.ne.s32.totalorder %s151, %s152
      %p164 = scmp.eq.s32.totalorder %s34, 1
      %p165 = por %p163, %p164
      %p167 = scmp.ne.s32.totalorder %s152, %s166
      %p168 = scmp.eq.s32.totalorder %s34, 0
      %p169 = por %p167, %p168
      %s171 = sadd.s32 %s170, 1
      %p174 = scmp.eq.s32.totalorder %s28, 1
      %p175 = scmp.ne.s32.totalorder %s170, %s172
      %p176 = scmp.eq.s32.totalorder %s28, 0
      %p177 = por %p175, %p176
      %p178 = scmp.ne.s32.totalorder %s170, %s172
      %p179 = scmp.eq.s32.totalorder %s33, 1
      %p180 = por %p178, %p179
      %p181 = scmp.ne.s32.totalorder %s172, %s173
      %p182 = scmp.eq.s32.totalorder %s33, 0
      %p183 = por %p181, %p182
      %p184 = scmp.ne.s32.totalorder %s172, %s173
      %p185 = scmp.eq.s32.totalorder %s34, 1
      %p186 = por %p184, %p185
      %p188 = scmp.ne.s32.totalorder %s173, %s187
      %p189 = scmp.eq.s32.totalorder %s34, 0
      %p190 = por %p188, %p189
      %s192 = sadd.s32 %s191, 1
      %p195 = scmp.eq.s32.totalorder %s28, 1
      %p196 = scmp.ne.s32.totalorder %s191, %s193
      %p197 = scmp.eq.s32.totalorder %s28, 0
      %p198 = por %p196, %p197
      %p199 = scmp.ne.s32.totalorder %s191, %s193
      %p200 = scmp.eq.s32.totalorder %s33, 1
      %p201 = por %p199, %p200
      %p202 = scmp.ne.s32.totalorder %s193, %s194
      %p203 = scmp.eq.s32.totalorder %s33, 0
      %p204 = por %p202, %p203
      %p205 = scmp.ne.s32.totalorder %s193, %s194
      %p206 = scmp.eq.s32.totalorder %s34, 1
      %p207 = por %p205, %p206
      %p209 = scmp.ne.s32.totalorder %s194, %s208
      %p210 = scmp.eq.s32.totalorder %s34, 0
      %p211 = por %p209, %p210
      %s213 = sadd.s32 %s212, 1
      %p216 = scmp.eq.s32.totalorder %s28, 1
      %p217 = scmp.ne.s32.totalorder %s212, %s214
      %p218 = scmp.eq.s32.totalorder %s28, 0
      %p219 = por %p217, %p218
      %p220 = scmp.ne.s32.totalorder %s212, %s214
      %p221 = scmp.eq.s32.totalorder %s33, 1
      %p222 = por %p220, %p221
      %p223 = scmp.ne.s32.totalorder %s214, %s215
      %p224 = scmp.eq.s32.totalorder %s33, 0
      %p225 = por %p223, %p224
      %p226 = scmp.ne.s32.totalorder %s214, %s215
      %p227 = scmp.eq.s32.totalorder %s34, 1
      %p228 = por %p226, %p227
      %p230 = scmp.ne.s32.totalorder %s215, %s229
      %p231 = scmp.eq.s32.totalorder %s34, 0
      %p232 = por %p230, %p231
      %s234 = sadd.s32 %s233, 1
      %p237 = scmp.eq.s32.totalorder %s28, 1
      %p238 = scmp.ne.s32.totalorder %s233, %s235
      %p239 = scmp.eq.s32.totalorder %s28, 0
      %p240 = por %p238, %p239
      %p241 = scmp.ne.s32.totalorder %s233, %s235
      %p242 = scmp.eq.s32.totalorder %s33, 1
      %p243 = por %p241, %p242
      %p244 = scmp.ne.s32.totalorder %s235, %s236
      %p245 = scmp.eq.s32.totalorder %s33, 0
      %p246 = por %p244, %p245
      %p247 = scmp.ne.s32.totalorder %s235, %s236
      %p248 = scmp.eq.s32.totalorder %s34, 1
      %p249 = por %p247, %p248
      %p251 = scmp.ne.s32.totalorder %s236, %s250
      %p252 = scmp.eq.s32.totalorder %s34, 0
      %p253 = por %p251, %p252
      %s255 = sadd.s32 %s254, 1
      %p258 = scmp.eq.s32.totalorder %s28, 1
      %p259 = scmp.ne.s32.totalorder %s254, %s256
      %p260 = scmp.eq.s32.totalorder %s28, 0
      %p261 = por %p259, %p260
      %p262 = scmp.ne.s32.totalorder %s254, %s256
      %p263 = scmp.eq.s32.totalorder %s33, 1
      %p264 = por %p262, %p263
      %p265 = scmp.ne.s32.totalorder %s256, %s257
      %p266 = scmp.eq.s32.totalorder %s33, 0
      %p267 = por %p265, %p266
      %p268 = scmp.ne.s32.totalorder %s256, %s257
      %p269 = scmp.eq.s32.totalorder %s34, 1
      %p270 = por %p268, %p269
      %p272 = scmp.ne.s32.totalorder %s257, %s271
      %p273 = scmp.eq.s32.totalorder %s34, 0
      %p274 = por %p272, %p273
      %s276 = sadd.s32 %s275, 1
      %p279 = scmp.eq.s32.totalorder %s28, 1
      %p280 = scmp.ne.s32.totalorder %s275, %s277
      %p281 = scmp.eq.s32.totalorder %s28, 0
      %p282 = por %p280, %p281
      %p283 = scmp.ne.s32.totalorder %s275, %s277
      %p284 = scmp.eq.s32.totalorder %s33, 1
      %p285 = por %p283, %p284
      %p286 = scmp.ne.s32.totalorder %s277, %s278
      %p287 = scmp.eq.s32.totalorder %s33, 0
      %p288 = por %p286, %p287
      %p289 = scmp.ne.s32.totalorder %s277, %s278
      %p290 = scmp.eq.s32.totalorder %s34, 1
      %p291 = por %p289, %p290
      %p293 = scmp.ne.s32.totalorder %s278, %s292
      %p294 = scmp.eq.s32.totalorder %s34, 0
      %p295 = por %p293, %p294
      %s296 = ssub.s32 %s35, %s47
      %s297 = ssub.s32 %s36, %s43
      %s298 = sor.u32 %s296, %s297
      %p299 = scmp.eq.s32.totalorder %s298, 0
      %s301 = sadd.s32 %s300, 1
      %s302 = scalar_select %p299, %s300, %s301
      %p305 = pneg %p299
      %p306 = scmp.eq.s32.totalorder %s28, 1
      %p307 = por %p305, %p306
      %p308 = scmp.ne.s32.totalorder %s300, %s303
      %p309 = scmp.eq.s32.totalorder %s28, 0
      %p310 = por %p308, %p309
      %p311 = scmp.ne.s32.totalorder %s300, %s303
      %p312 = scmp.eq.s32.totalorder %s33, 1
      %p313 = por %p311, %p312
      %p314 = scmp.ne.s32.totalorder %s303, %s304
      %p315 = scmp.eq.s32.totalorder %s33, 0
      %p316 = por %p314, %p315
      %p317 = scmp.ne.s32.totalorder %s303, %s304
      %p318 = scmp.eq.s32.totalorder %s34, 1
      %p319 = por %p317, %p318
      %p321 = scmp.ne.s32.totalorder %s304, %s320
      %p322 = scmp.eq.s32.totalorder %s34, 0
      %p323 = por %p321, %p322
      %p324 = scmp.le.s32.totalorder 1, %s28
      %p325 = scmp.lt.s32.totalorder %s28, 3
      %p326 = pnand %p324, %p325
      %p327 = pneg %p326
      // Predicated region
      $region9: #{tpu_custom_call.1} parent=5 // pred_check
        _
      $region10: #{tpu_custom_call.1} parent=5 // pred_check_branch
        %329 = sbr.rel (%p326) target = $region12
      $region11: #{tpu_custom_call.1} parent=5 // pred_region
        %s330 = ssub.s32 %s28, 1
        // Predicated region
        $region13: #{tpu_custom_call.1} parent=11 // pred_check
          %p331 = pneg %p141
        $region14: #{tpu_custom_call.1} parent=11 // pred_check_branch
          %333 = sbr.rel (%p331) target = $region16
        $region15: #{tpu_custom_call.1} parent=11 // pred_region
          %s335 = ssub.s32 256, 256
          %336 = vsyncadd [#allocation12], %s335
          %s337 = sshll.u32 [#allocation11], 4
          %s338 = int_to_ptr.vmem [resolvable:$true] %s337
          %343 = dma.hbm_to_vmem [thread:$0]  %s3, 256, %s338, [#allocation12], 64, 64, 4
        $region16: #{tpu_custom_call.1} parent=11 // pred_fallthru
          _
        // Predicated region
        $region17: #{tpu_custom_call.1} parent=11 // pred_check
          %p344 = pneg %p162
        $region18: #{tpu_custom_call.1} parent=11 // pred_check_branch
          %346 = sbr.rel (%p344) target = $region20
        $region19: #{tpu_custom_call.1} parent=11 // pred_region
          _
        $region20: #{tpu_custom_call.1} parent=11 // pred_fallthru
          _
        // Predicated region
        $region21: #{tpu_custom_call.1} parent=11 // pred_check
          %p347 = pneg %p183
        $region22: #{tpu_custom_call.1} parent=11 // pred_check_branch
          %349 = sbr.rel (%p347) target = $region24
        $region23: #{tpu_custom_call.1} parent=11 // pred_region
          _
        $region24: #{tpu_custom_call.1} parent=11 // pred_fallthru
          _
        // Predicated region
        $region25: #{tpu_custom_call.1} parent=11 // pred_check
          %p350 = pneg %p204
        $region26: #{tpu_custom_call.1} parent=11 // pred_check_branch
          %352 = sbr.rel (%p350) target = $region28
        $region27: #{tpu_custom_call.1} parent=11 // pred_region
          _
        $region28: #{tpu_custom_call.1} parent=11 // pred_fallthru
          _
        // Predicated region
        $region29: #{tpu_custom_call.1} parent=11 // pred_check
          %p353 = pneg %p225
        $region30: #{tpu_custom_call.1} parent=11 // pred_check_branch
          %355 = sbr.rel (%p353) target = $region32
        $region31: #{tpu_custom_call.1} parent=11 // pred_region
          %s357 = ssub.s32 256, 256
          %358 = vsyncadd [#allocation12], %s357
          %s359 = sshll.u32 [#allocation13], 4
          %s360 = int_to_ptr.vmem [resolvable:$true] %s359
          %365 = dma.hbm_to_vmem [thread:$0]  %s7, 256, %s360, [#allocation12], 64, 64, 4
        $region32: #{tpu_custom_call.1} parent=11 // pred_fallthru
          _
        // Predicated region
        $region33: #{tpu_custom_call.1} parent=11 // pred_check
          %p366 = pneg %p246
        $region34: #{tpu_custom_call.1} parent=11 // pred_check_branch
          %368 = sbr.rel (%p366) target = $region36
        $region35: #{tpu_custom_call.1} parent=11 // pred_region
          %s370 = ssub.s32 16, 16
          %371 = vsyncadd [#allocation15], %s370
          %s373 = sshll.u32 [#allocation14], 4
          %s374 = int_to_ptr.vmem [resolvable:$true] %s373
          %376 = dma.hbm_to_vmem [thread:$0]  %s8, 16, %s374, [#allocation15]
        $region36: #{tpu_custom_call.1} parent=11 // pred_fallthru
          _
        // Predicated region
        $region37: #{tpu_custom_call.1} parent=11 // pred_check
          %p377 = pneg %p267
        $region38: #{tpu_custom_call.1} parent=11 // pred_check_branch
          %379 = sbr.rel (%p377) target = $region40
        $region39: #{tpu_custom_call.1} parent=11 // pred_region
          _
        $region40: #{tpu_custom_call.1} parent=11 // pred_fallthru
          _
        // Predicated region
        $region41: #{tpu_custom_call.1} parent=11 // pred_check
          %p380 = pneg %p288
        $region42: #{tpu_custom_call.1} parent=11 // pred_check_branch
          %382 = sbr.rel (%p380) target = $region44
        $region43: #{tpu_custom_call.1} parent=11 // pred_region
          _
        $region44: #{tpu_custom_call.1} parent=11 // pred_fallthru
          _
      $region12: #{tpu_custom_call.1} parent=5 // pred_fallthru
        _
      %p383 = scmp.lt.s32.totalorder %s28, 2
      // Predicated region
      $region45: #{tpu_custom_call.1} parent=5 // pred_check
        %p384 = pneg %p383
      $region46: #{tpu_custom_call.1} parent=5 // pred_check_branch
        %386 = sbr.rel (%p384) target = $region48
      $region47: #{tpu_custom_call.1} parent=5 // pred_region
        // Predicated region
        $region49: #{tpu_custom_call.1} parent=47 // pred_check
          %p387 = pneg %p62
        $region50: #{tpu_custom_call.1} parent=47 // pred_check_branch
          %389 = sbr.rel (%p387) target = $region52
        $region51: #{tpu_custom_call.1} parent=47 // pred_region
          %s390 = sand.u32 %s52, 1
          %s391 = scalar_lea.sflag [#allocation6], %s390
          %s392 = sand.u32 %s52, 1
          %s393 = smul.addr %s392, 4
          %s394 = scalar_lea.vmem [#allocation5], %s393
          %s396 = ssub.s32 64, 64
          %397 = vsyncadd %s391, %s396
          %s398 = sadd.s32 %s36, %s35
          %s399 = smul.addr %s398, 64
          %s400 = scalar_lea.hbm %s0, %s399
          %s402 = sshll.u32 %s394, 4
          %s403 = int_to_ptr.vmem [resolvable:$true] %s402
          %405 = dma.hbm_to_vmem [thread:$0]  %s400, 64, %s403, %s391
        $region52: #{tpu_custom_call.1} parent=47 // pred_fallthru
          _
        // Predicated region
        $region53: #{tpu_custom_call.1} parent=47 // pred_check
          %p406 = pneg %p88
        $region54: #{tpu_custom_call.1} parent=47 // pred_check_branch
          %408 = sbr.rel (%p406) target = $region56
        $region55: #{tpu_custom_call.1} parent=47 // pred_region
          %s409 = sand.u32 %s28, 1
          %s410 = scalar_lea.sflag [#allocation9], %s409
          %s411 = sand.u32 %s78, 1
          %s412 = smul.addr %s411, 4
          %s413 = scalar_lea.vmem [#allocation8], %s412
          %s415 = ssub.s32 64, 64
          %416 = vsyncadd %s410, %s415
          %s417 = smul.addr %s35, 64
          %s418 = scalar_lea.hbm %s1, %s417
          %s420 = sshll.u32 %s413, 4
          %s421 = int_to_ptr.vmem [resolvable:$true] %s420
          %423 = dma.hbm_to_vmem [thread:$0]  %s418, 64, %s421, %s410
        $region56: #{tpu_custom_call.1} parent=47 // pred_fallthru
          _
        // Predicated region
        $region57: #{tpu_custom_call.1} parent=47 // pred_check
          %p424 = pneg %p114
        $region58: #{tpu_custom_call.1} parent=47 // pred_check_branch
          %426 = sbr.rel (%p424) target = $region60
        $region59: #{tpu_custom_call.1} parent=47 // pred_region
          %s427 = sand.u32 %s28, 1
          %s428 = scalar_lea.sflag [#allocation9], %s427
          %s429 = sand.u32 %s104, 1
          %s430 = smul.addr %s429, 4
          %s431 = scalar_lea.vmem [#allocation10], %s430
          %s433 = ssub.s32 64, 64
          %434 = vsyncadd %s428, %s433
          %s435 = smul.addr %s35, 64
          %s436 = scalar_lea.hbm %s2, %s435
          %s438 = sshll.u32 %s431, 4
          %s439 = int_to_ptr.vmem [resolvable:$true] %s438
          %441 = dma.hbm_to_vmem [thread:$0]  %s436, 64, %s439, %s428
        $region60: #{tpu_custom_call.1} parent=47 // pred_fallthru
          _
      $region48: #{tpu_custom_call.1} parent=5 // pred_fallthru
        _
      %p442 = scmp.le.s32.totalorder 1, %s28
      %p443 = scmp.lt.s32.totalorder %s28, 3
      %p444 = pnand %p442, %p443
      %p445 = pneg %p444
      // Predicated region
      $region61: #{tpu_custom_call.1} parent=5 // pred_check
        _
      $region62: #{tpu_custom_call.1} parent=5 // pred_check_branch
        %447 = sbr.rel (%p444) target = $region64
      $region63: #{tpu_custom_call.1} parent=5 // pred_region
        %s448 = ssub.s32 %s28, 1
        %s449 = sand.u32 %s55, 1
        %s450 = scalar_lea.sflag [#allocation6], %s449
        %s451 = sand.u32 %s55, 1
        %s452 = smul.addr %s451, 4
        %s453 = scalar_lea.vmem [#allocation5], %s452
        // Predicated region
        $region65: #{tpu_custom_call.1} parent=63 // pred_check
          %p454 = pneg %p68
        $region66: #{tpu_custom_call.1} parent=63 // pred_check_branch
          %456 = sbr.rel (%p454) target = $region68
        $region67: #{tpu_custom_call.1} parent=63 // pred_region
          %457 = dma.done %s450, 64
        $region68: #{tpu_custom_call.1} parent=63 // pred_fallthru
          _
        %s458 = sand.u32 %s33, 1
        %s459 = scalar_lea.sflag [#allocation9], %s458
        %s460 = sand.u32 %s81, 1
        %s461 = smul.addr %s460, 4
        %s462 = scalar_lea.vmem [#allocation8], %s461
        // Predicated region
        $region69: #{tpu_custom_call.1} parent=63 // pred_check
          %p463 = pneg %p94
        $region70: #{tpu_custom_call.1} parent=63 // pred_check_branch
          %465 = sbr.rel (%p463) target = $region72
        $region71: #{tpu_custom_call.1} parent=63 // pred_region
          %466 = dma.done %s459, 64
        $region72: #{tpu_custom_call.1} parent=63 // pred_fallthru
          _
        %s467 = sand.u32 %s33, 1
        %s468 = scalar_lea.sflag [#allocation9], %s467
        %s469 = sand.u32 %s107, 1
        %s470 = smul.addr %s469, 4
        %s471 = scalar_lea.vmem [#allocation10], %s470
        // Predicated region
        $region73: #{tpu_custom_call.1} parent=63 // pred_check
          %p472 = pneg %p120
        $region74: #{tpu_custom_call.1} parent=63 // pred_check_branch
          %474 = sbr.rel (%p472) target = $region76
        $region75: #{tpu_custom_call.1} parent=63 // pred_region
          %475 = dma.done %s468, 64
        $region76: #{tpu_custom_call.1} parent=63 // pred_fallthru
          _
        // Predicated region
        $region77: #{tpu_custom_call.1} parent=63 // pred_check
          %p476 = pneg %p141
        $region78: #{tpu_custom_call.1} parent=63 // pred_check_branch
          %478 = sbr.rel (%p476) target = $region80
        $region79: #{tpu_custom_call.1} parent=63 // pred_region
          %479 = dma.done [#allocation12], 256
        $region80: #{tpu_custom_call.1} parent=63 // pred_fallthru
          _
        // Predicated region
        $region81: #{tpu_custom_call.1} parent=63 // pred_check
          %p480 = pneg %p225
        $region82: #{tpu_custom_call.1} parent=63 // pred_check_branch
          %482 = sbr.rel (%p480) target = $region84
        $region83: #{tpu_custom_call.1} parent=63 // pred_region
          %483 = dma.done [#allocation12], 256
        $region84: #{tpu_custom_call.1} parent=63 // pred_fallthru
          _
        // Predicated region
        $region85: #{tpu_custom_call.1} parent=63 // pred_check
          %p484 = pneg %p246
        $region86: #{tpu_custom_call.1} parent=63 // pred_check_branch
          %486 = sbr.rel (%p484) target = $region88
        $region87: #{tpu_custom_call.1} parent=63 // pred_region
          %487 = dma.done [#allocation15], 16
        $region88: #{tpu_custom_call.1} parent=63 // pred_fallthru
          _
        %s488 = sand.u32 %s55, 1
        %s489 = scalar_lea.sflag [#allocation6], %s488
        %s490 = sand.u32 %s55, 1
        %s491 = smul.addr %s490, 4
        %s492 = scalar_lea.vmem [#allocation5], %s491
        %p493 = pneg %p68
        %p494 = pneg %p65
        %s495 = sand.u32 %s33, 1
        %s496 = scalar_lea.sflag [#allocation9], %s495
        %s497 = sand.u32 %s81, 1
        %s498 = smul.addr %s497, 4
        %s499 = scalar_lea.vmem [#allocation8], %s498
        %p500 = pneg %p94
        %p501 = pneg %p91
        %s502 = sand.u32 %s33, 1
        %s503 = scalar_lea.sflag [#allocation9], %s502
        %s504 = sand.u32 %s107, 1
        %s505 = smul.addr %s504, 4
        %s506 = scalar_lea.vmem [#allocation10], %s505
        %p507 = pneg %p120
        %p508 = pneg %p117
        %p509 = pneg %p141
        %p510 = pneg %p138
        %p511 = pneg %p162
        %p512 = pneg %p159
        %p513 = pneg %p183
        %p514 = pneg %p180
        %p515 = pneg %p204
        %p516 = pneg %p201
        %p517 = pneg %p225
        %p518 = pneg %p222
        %p519 = pneg %p246
        %p520 = pneg %p243
        %p521 = pneg %p267
        %p522 = pneg %p264
        %p523 = pneg %p288
        %p524 = pneg %p285
        %p525 = pneg %p316
        %p526 = pneg %p313
        %s527 = sand.u32 %s303, 1
        %s528 = scalar_lea.sflag [#allocation7], %s527
        %s529 = sand.u32 %s303, 1
        %s530 = smul.addr %s529, 8
        %s531 = scalar_lea.vmem [#allocation16], %s530
        %p533 = scmp.eq.s32.totalorder %s38, 0
        // Predicated region
        $region89: #{tpu_custom_call.1} parent=63 // pred_check
          %p534 = pneg %p533
        $region90: #{tpu_custom_call.1} parent=63 // pred_check_branch
          %536 = sbr.rel (%p534) target = $region92
        $region91: #{tpu_custom_call.1} parent=63 // pred_region
          %v537 = vld [vmem:[%s462] sm:$0xf]
          %v538 = vld [vmem:[%s5] sm:$0xf]
          %v539 = vld [vmem:[%s5 + $0x4] sm:$0xf]
          %v540 = vld [vmem:[%s5 + $0x8] sm:$0xf]
          %v541 = vld [vmem:[%s5 + $0xc] sm:$0xf]
          %v542 = vld [vmem:[%s6] sm:$0x1]
          %v544 = vlaneseq
          %v545 = vshrl.u32 %v544, 7
          %v546 = vsub.s32 0, %v545
          %v547 = vrot.slane %v542, %v546
          %v553 = vunpack.c.l.b16 %v538
          %v554 = vunpack.c.l.b16 %v539
          %v555 = vunpack.c.l.b16 %v540
          %v556 = vunpack.c.l.b16 %v541
          %v557 = vpack.c.b16 %v554, %v553
          %v558 = vpack.c.b16 %v556, %v555
          %vm561 = vcmask 261120
          %v563 = vsel %vm561, %v537, 0
          %565 = vmatprep.subr.bf16.mxu0 0
          %566 = vmatpush1.bf16.msra.mxu0 %v557
          %567 = vmatprep.subr.bf16.mxu0 0
          %568 = vmatpush1.bf16.msra.mxu0 %v558
          %569 = vmatprep.subr.bf16.mxu0 0
          %570 = vmatpush1.bf16.msra.mxu0 0
          %571 = vmatprep.subr.bf16.mxu0 0
          %572 = vmatpush1.bf16.msra.mxu0 0
          %573 = vmatprep.subr.bf16.mxu0 0
          %574 = vmatpush1.bf16.msra.mxu0 0
          %575 = vmatprep.subr.bf16.mxu0 0
          %576 = vmatpush1.bf16.msra.mxu0 0
          %577 = vmatprep.subr.bf16.mxu0 0
          %578 = vmatpush1.bf16.msra.mxu0 0
          %579 = vmatprep.subr.bf16.mxu0 0
          %580 = vmatpush1.bf16.msra.mxu0 0
          %581 = vmatprep.subr.bf16.mxu0 0
          %582 = vmatpush1.bf16.msra.mxu0 0
          %583 = vmatprep.subr.bf16.mxu0 0
          %584 = vmatpush1.bf16.msra.mxu0 0
          %585 = vmatprep.subr.bf16.mxu0 0
          %586 = vmatpush1.bf16.msra.mxu0 0
          %587 = vmatprep.subr.bf16.mxu0 0
          %588 = vmatpush1.bf16.msra.mxu0 0
          %589 = vmatprep.subr.bf16.mxu0 0
          %590 = vmatpush1.bf16.msra.mxu0 0
          %591 = vmatprep.subr.bf16.mxu0 0
          %592 = vmatpush1.bf16.msra.mxu0 0
          %593 = vmatprep.subr.bf16.mxu0 0
          %594 = vmatpush1.bf16.msra.mxu0 0
          %595 = vmatprep.subr.bf16.mxu0 0
          %596 = vmatpush1.bf16.msra.mxu0 0
          %597 = vmatprep.mubr.bf16.mxu0 0
          %598 = vmatmul.mubr.bf16.gmra.mrb[0].mxu0 %v563
          %v599 = vpop.f32.mrb[0].mxu0
          %v600 = vadd.f32 %v547, %v599
          %v601 = vpop.f32.mrb[0].mxu0
          %v602 = vpop.f32.mrb[0].mxu0
          %v603 = vpop.f32.mrb[0].mxu0
          %604 = vdwg.mxu0
          %v605 = vld [vmem:[%s471] sm:$0xf]
          %v606 = vld [vmem:[#allocation13] sm:$0xf]
          %v607 = vld [vmem:[#allocation13 + $0x4] sm:$0xf]
          %v608 = vld [vmem:[#allocation13 + $0x8] sm:$0xf]
          %v609 = vld [vmem:[#allocation13 + $0xc] sm:$0xf]
          %v610 = vld [vmem:[#allocation14] sm:$0x1]
          %v612 = vlaneseq
          %v613 = vshrl.u32 %v612, 7
          %v614 = vsub.s32 0, %v613
          %v615 = vrot.slane %v610, %v614
          %v621 = vunpack.c.l.b16 %v606
          %v622 = vunpack.c.l.b16 %v607
          %v623 = vunpack.c.l.b16 %v608
          %v624 = vunpack.c.l.b16 %v609
          %v625 = vpack.c.b16 %v622, %v621
          %v626 = vpack.c.b16 %v624, %v623
          %v630 = vsel %vm561, %v605, 0
          %632 = vmatprep.subr.bf16.mxu0 0
          %633 = vmatpush1.bf16.msra.mxu0 %v625
          %634 = vmatprep.subr.bf16.mxu0 0
          %635 = vmatpush1.bf16.msra.mxu0 %v626
          %636 = vmatprep.subr.bf16.mxu0 0
          %637 = vmatpush1.bf16.msra.mxu0 0
          %638 = vmatprep.subr.bf16.mxu0 0
          %639 = vmatpush1.bf16.msra.mxu0 0
          %640 = vmatprep.subr.bf16.mxu0 0
          %641 = vmatpush1.bf16.msra.mxu0 0
          %642 = vmatprep.subr.bf16.mxu0 0
          %643 = vmatpush1.bf16.msra.mxu0 0
          %644 = vmatprep.subr.bf16.mxu0 0
          %645 = vmatpush1.bf16.msra.mxu0 0
          %646 = vmatprep.subr.bf16.mxu0 0
          %647 = vmatpush1.bf16.msra.mxu0 0
          %648 = vmatprep.subr.bf16.mxu0 0
          %649 = vmatpush1.bf16.msra.mxu0 0
          %650 = vmatprep.subr.bf16.mxu0 0
          %651 = vmatpush1.bf16.msra.mxu0 0
          %652 = vmatprep.subr.bf16.mxu0 0
          %653 = vmatpush1.bf16.msra.mxu0 0
          %654 = vmatprep.subr.bf16.mxu0 0
          %655 = vmatpush1.bf16.msra.mxu0 0
          %656 = vmatprep.subr.bf16.mxu0 0
          %657 = vmatpush1.bf16.msra.mxu0 0
          %658 = vmatprep.subr.bf16.mxu0 0
          %659 = vmatpush1.bf16.msra.mxu0 0
          %660 = vmatprep.subr.bf16.mxu0 0
          %661 = vmatpush1.bf16.msra.mxu0 0
          %662 = vmatprep.subr.bf16.mxu0 0
          %663 = vmatpush1.bf16.msra.mxu0 0
          %664 = vmatprep.mubr.bf16.mxu0 0
          %665 = vmatmul.mubr.bf16.gmra.mrb[0].mxu0 %v630
          %v666 = vpop.f32.mrb[0].mxu0
          %v667 = vadd.f32 %v615, %v666
          %v668 = vpop.f32.mrb[0].mxu0
          %v669 = vpop.f32.mrb[0].mxu0
          %v670 = vpop.f32.mrb[0].mxu0
          %671 = vdwg.mxu0
          %v672 = vpack.c.bf16 %v600, %v600
          %vm673 = vcmask 257024
          %674 = vst.msk [vmem:[#allocation2] sm:$0xf] %vm673, %v672
          %v675 = vpack.c.bf16 %v667, %v667
          %676 = vst.msk [vmem:[#allocation3] sm:$0xf] %vm673, %v675
        $region92: #{tpu_custom_call.1} parent=63 // pred_fallthru
          _
        %v677 = vld [vmem:[%s453] sm:$0xf]
        %v678 = vld [vmem:[#allocation11] sm:$0xf]
        %v679 = vld [vmem:[#allocation11 + $0x4] sm:$0xf]
        %v680 = vld [vmem:[#allocation11 + $0x8] sm:$0xf]
        %v681 = vld [vmem:[#allocation11 + $0xc] sm:$0xf]
        %v682 = vld [vmem:[%s4] sm:$0x1]
        %v684 = vlaneseq
        %v685 = vshrl.u32 %v684, 7
        %v686 = vsub.s32 0, %v685
        %v687 = vrot.slane %v682, %v686
        %v693 = vunpack.c.l.b16 %v678
        %v694 = vunpack.c.l.b16 %v679
        %v695 = vunpack.c.l.b16 %v680
        %v696 = vunpack.c.l.b16 %v681
        %v697 = vpack.c.b16 %v694, %v693
        %v698 = vpack.c.b16 %v696, %v695
        %vm701 = vcmask 261120
        %v703 = vsel %vm701, %v677, 0
        %705 = vmatprep.subr.bf16.mxu0 0
        %706 = vmatpush1.bf16.msra.mxu0 %v697
        %707 = vmatprep.subr.bf16.mxu0 0
        %708 = vmatpush1.bf16.msra.mxu0 %v698
        %709 = vmatprep.subr.bf16.mxu0 0
        %710 = vmatpush1.bf16.msra.mxu0 0
        %711 = vmatprep.subr.bf16.mxu0 0
        %712 = vmatpush1.bf16.msra.mxu0 0
        %713 = vmatprep.subr.bf16.mxu0 0
        %714 = vmatpush1.bf16.msra.mxu0 0
        %715 = vmatprep.subr.bf16.mxu0 0
        %716 = vmatpush1.bf16.msra.mxu0 0
        %717 = vmatprep.subr.bf16.mxu0 0
        %718 = vmatpush1.bf16.msra.mxu0 0
        %719 = vmatprep.subr.bf16.mxu0 0
        %720 = vmatpush1.bf16.msra.mxu0 0
        %721 = vmatprep.subr.bf16.mxu0 0
        %722 = vmatpush1.bf16.msra.mxu0 0
        %723 = vmatprep.subr.bf16.mxu0 0
        %724 = vmatpush1.bf16.msra.mxu0 0
        %725 = vmatprep.subr.bf16.mxu0 0
        %726 = vmatpush1.bf16.msra.mxu0 0
        %727 = vmatprep.subr.bf16.mxu0 0
        %728 = vmatpush1.bf16.msra.mxu0 0
        %729 = vmatprep.subr.bf16.mxu0 0
        %730 = vmatpush1.bf16.msra.mxu0 0
        %731 = vmatprep.subr.bf16.mxu0 0
        %732 = vmatpush1.bf16.msra.mxu0 0
        %733 = vmatprep.subr.bf16.mxu0 0
        %734 = vmatpush1.bf16.msra.mxu0 0
        %735 = vmatprep.subr.bf16.mxu0 0
        %736 = vmatpush1.bf16.msra.mxu0 0
        %737 = vmatprep.mubr.bf16.mxu0 0
        %738 = vmatmul.mubr.bf16.gmra.mrb[0].mxu0 %v703
        %v739 = vpop.f32.mrb[0].mxu0
        %v740 = vadd.f32 %v687, %v739
        %v741 = vpop.f32.mrb[0].mxu0
        %v742 = vpop.f32.mrb[0].mxu0
        %v743 = vpop.f32.mrb[0].mxu0
        %744 = vdwg.mxu0
        %v745 = vpack.c.bf16 %v740, %v740
        %v746 = vld [vmem:[#allocation2] sm:$0xf]
        %v747 = vld [vmem:[#allocation3] sm:$0xf]
        %vm748 = vcmask 64512
        %v750 = vsel %vm748, %v745, 0
        %v753 = vsel %vm748, %v746, 0
        %755 = vmatprep.subr.bf16.mxu0 0
        %756 = vmatpush1.bf16.xpose.msra.mxu0 %v753
        %757 = vmatprep.subr.bf16.mxu0 0
        %758 = vmatpush1.bf16.xpose.msra.mxu0 0
        %759 = vmatprep.subr.bf16.mxu0 0
        %760 = vmatpush1.bf16.xpose.msra.mxu0 0
        %761 = vmatprep.subr.bf16.mxu0 0
        %762 = vmatpush1.bf16.xpose.msra.mxu0 0
        %763 = vmatprep.subr.bf16.mxu0 0
        %764 = vmatpush1.bf16.xpose.msra.mxu0 0
        %765 = vmatprep.subr.bf16.mxu0 0
        %766 = vmatpush1.bf16.xpose.msra.mxu0 0
        %767 = vmatprep.subr.bf16.mxu0 0
        %768 = vmatpush1.bf16.xpose.msra.mxu0 0
        %769 = vmatprep.subr.bf16.mxu0 0
        %770 = vmatpush1.bf16.xpose.msra.mxu0 0
        %771 = vmatprep.subr.bf16.mxu0 0
        %772 = vmatpush1.bf16.xpose.msra.mxu0 0
        %773 = vmatprep.subr.bf16.mxu0 0
        %774 = vmatpush1.bf16.xpose.msra.mxu0 0
        %775 = vmatprep.subr.bf16.mxu0 0
        %776 = vmatpush1.bf16.xpose.msra.mxu0 0
        %777 = vmatprep.subr.bf16.mxu0 0
        %778 = vmatpush1.bf16.xpose.msra.mxu0 0
        %779 = vmatprep.subr.bf16.mxu0 0
        %780 = vmatpush1.bf16.xpose.msra.mxu0 0
        %781 = vmatprep.subr.bf16.mxu0 0
        %782 = vmatpush1.bf16.xpose.msra.mxu0 0
        %783 = vmatprep.subr.bf16.mxu0 0
        %784 = vmatpush1.bf16.xpose.msra.mxu0 0
        %785 = vmatprep.subr.bf16.mxu0 0
        %786 = vmatpush1.bf16.xpose.msra.mxu0 0
        %787 = vmatprep.mubr.bf16.mxu0 0
        %788 = vmatmul.mubr.bf16.gmra.mrb[0].mxu0 %v750
        %v789 = vpop.f32.mrb[0].mxu0
        %v790 = vadd.f32 0.0, %v789
        %v791 = vpop.f32.mrb[0].mxu0
        %v792 = vpop.f32.mrb[0].mxu0
        %v793 = vpop.f32.mrb[0].mxu0
        %794 = vdwg.mxu0
        %v795 = vsel %vm748, %v790, -inf
        %796 = vmax.xlane.f32.xlu0 %v795
        %v797 = vpop.xlane.xlu0 %796
        %v798 = vsub.f32 %v790, %v797
        %v799 = vmul.f32 %v798, 1.442695
        %v800 = vpow.pop %v799
        %v801 = vsel %vm748, %v800, 0.0
        %802 = vadd.xlane.f32.xlu0 %v801
        %v803 = vpop.xlane.xlu0 %802
        %v804 = vrcp.pop %v803
        %v805 = vmul.f32 %v800, %v804
        %v806 = vpack.c.bf16 %v805, %v805
        %v808 = vsel %vm748, %v806, 0
        %vm810 = vcmask 1043456
        %v812 = vsel %vm810, %v747, 0
        %814 = vmatprep.subr.bf16.mxu0 0
        %815 = vmatpush1.bf16.msra.mxu0 %v812
        %816 = vmatprep.subr.bf16.mxu0 0
        %817 = vmatpush1.bf16.msra.mxu0 0
        %818 = vmatprep.subr.bf16.mxu0 0
        %819 = vmatpush1.bf16.msra.mxu0 0
        %820 = vmatprep.subr.bf16.mxu0 0
        %821 = vmatpush1.bf16.msra.mxu0 0
        %822 = vmatprep.subr.bf16.mxu0 0
        %823 = vmatpush1.bf16.msra.mxu0 0
        %824 = vmatprep.subr.bf16.mxu0 0
        %825 = vmatpush1.bf16.msra.mxu0 0
        %826 = vmatprep.subr.bf16.mxu0 0
        %827 = vmatpush1.bf16.msra.mxu0 0
        %828 = vmatprep.subr.bf16.mxu0 0
        %829 = vmatpush1.bf16.msra.mxu0 0
        %830 = vmatprep.subr.bf16.mxu0 0
        %831 = vmatpush1.bf16.msra.mxu0 0
        %832 = vmatprep.subr.bf16.mxu0 0
        %833 = vmatpush1.bf16.msra.mxu0 0
        %834 = vmatprep.subr.bf16.mxu0 0
        %835 = vmatpush1.bf16.msra.mxu0 0
        %836 = vmatprep.subr.bf16.mxu0 0
        %837 = vmatpush1.bf16.msra.mxu0 0
        %838 = vmatprep.subr.bf16.mxu0 0
        %839 = vmatpush1.bf16.msra.mxu0 0
        %840 = vmatprep.subr.bf16.mxu0 0
        %841 = vmatpush1.bf16.msra.mxu0 0
        %842 = vmatprep.subr.bf16.mxu0 0
        %843 = vmatpush1.bf16.msra.mxu0 0
        %844 = vmatprep.subr.bf16.mxu0 0
        %845 = vmatpush1.bf16.msra.mxu0 0
        %846 = vmatprep.mubr.bf16.mxu0 0
        %847 = vmatmul.mubr.bf16.gmra.mrb[0].mxu0 %v808
        %v848 = vpop.f32.mrb[0].mxu0
        %v849 = vadd.f32 0.0, %v848
        %v850 = vpop.f32.mrb[0].mxu0
        %v851 = vpop.f32.mrb[0].mxu0
        %v852 = vpop.f32.mrb[0].mxu0
        %853 = vdwg.mxu0
        %v854 = vpack.c.bf16 %v849, %v849
        %vm855 = vcmask 60416
        %856 = vst.msk [vmem:[#allocation4] sm:$0xf] %vm855, %v854
        %858 = vrot.lane.b32.xlu0 %v745, 120
        %v859 = vpop.permute.xlu0 %858
        %v861 = vunpack.c.l.b16 %v746
        %v862 = vpack.c.b16 %v861, %v861
        %863 = vrot.lane.b32.xlu0 %v862, 120
        %v864 = vpop.permute.xlu0 %863
        %v866 = vsel %vm748, %v859, 0
        %v869 = vsel %vm748, %v864, 0
        %871 = vmatprep.subr.bf16.mxu0 0
        %872 = vmatpush1.bf16.xpose.msra.mxu0 %v869
        %873 = vmatprep.subr.bf16.mxu0 0
        %874 = vmatpush1.bf16.xpose.msra.mxu0 0
        %875 = vmatprep.subr.bf16.mxu0 0
        %876 = vmatpush1.bf16.xpose.msra.mxu0 0
        %877 = vmatprep.subr.bf16.mxu0 0
        %878 = vmatpush1.bf16.xpose.msra.mxu0 0
        %879 = vmatprep.subr.bf16.mxu0 0
        %880 = vmatpush1.bf16.xpose.msra.mxu0 0
        %881 = vmatprep.subr.bf16.mxu0 0
        %882 = vmatpush1.bf16.xpose.msra.mxu0 0
        %883 = vmatprep.subr.bf16.mxu0 0
        %884 = vmatpush1.bf16.xpose.msra.mxu0 0
        %885 = vmatprep.subr.bf16.mxu0 0
        %886 = vmatpush1.bf16.xpose.msra.mxu0 0
        %887 = vmatprep.subr.bf16.mxu0 0
        %888 = vmatpush1.bf16.xpose.msra.mxu0 0
        %889 = vmatprep.subr.bf16.mxu0 0
        %890 = vmatpush1.bf16.xpose.msra.mxu0 0
        %891 = vmatprep.subr.bf16.mxu0 0
        %892 = vmatpush1.bf16.xpose.msra.mxu0 0
        %893 = vmatprep.subr.bf16.mxu0 0
        %894 = vmatpush1.bf16.xpose.msra.mxu0 0
        %895 = vmatprep.subr.bf16.mxu0 0
        %896 = vmatpush1.bf16.xpose.msra.mxu0 0
        %897 = vmatprep.subr.bf16.mxu0 0
        %898 = vmatpush1.bf16.xpose.msra.mxu0 0
        %899 = vmatprep.subr.bf16.mxu0 0
        %900 = vmatpush1.bf16.xpose.msra.mxu0 0
        %901 = vmatprep.subr.bf16.mxu0 0
        %902 = vmatpush1.bf16.xpose.msra.mxu0 0
        %903 = vmatprep.mubr.bf16.mxu0 0
        %904 = vmatmul.mubr.bf16.gmra.mrb[0].mxu0 %v866
        %v905 = vpop.f32.mrb[0].mxu0
        %v906 = vadd.f32 0.0, %v905
        %v907 = vpop.f32.mrb[0].mxu0
        %v908 = vpop.f32.mrb[0].mxu0
        %v909 = vpop.f32.mrb[0].mxu0
        %910 = vdwg.mxu0
        %v911 = vsel %vm748, %v906, -inf
        %912 = vmax.xlane.f32.xlu0 %v911
        %v913 = vpop.xlane.xlu0 %912
        %v914 = vsub.f32 %v906, %v913
        %v915 = vmul.f32 %v914, 1.442695
        %v916 = vpow.pop %v915
        %v917 = vsel %vm748, %v916, 0.0
        %918 = vadd.xlane.f32.xlu0 %v917
        %v919 = vpop.xlane.xlu0 %918
        %v920 = vrcp.pop %v919
        %v921 = vmul.f32 %v916, %v920
        %v922 = vpack.c.bf16 %v921, %v921
        %v924 = vunpack.c.l.b16 %v747
        %v925 = vpack.c.b16 %v924, %v924
        %926 = vrot.lane.b32.xlu0 %v925, 120
        %v927 = vpop.permute.xlu0 %926
        %v929 = vsel %vm748, %v922, 0
        %v932 = vsel %vm810, %v927, 0
        %934 = vmatprep.subr.bf16.mxu0 0
        %935 = vmatpush1.bf16.msra.mxu0 %v932
        %936 = vmatprep.subr.bf16.mxu0 0
        %937 = vmatpush1.bf16.msra.mxu0 0
        %938 = vmatprep.subr.bf16.mxu0 0
        %939 = vmatpush1.bf16.msra.mxu0 0
        %940 = vmatprep.subr.bf16.mxu0 0
        %941 = vmatpush1.bf16.msra.mxu0 0
        %942 = vmatprep.subr.bf16.mxu0 0
        %943 = vmatpush1.bf16.msra.mxu0 0
        %944 = vmatprep.subr.bf16.mxu0 0
        %945 = vmatpush1.bf16.msra.mxu0 0
        %946 = vmatprep.subr.bf16.mxu0 0
        %947 = vmatpush1.bf16.msra.mxu0 0
        %948 = vmatprep.subr.bf16.mxu0 0
        %949 = vmatpush1.bf16.msra.mxu0 0
        %950 = vmatprep.subr.bf16.mxu0 0
        %951 = vmatpush1.bf16.msra.mxu0 0
        %952 = vmatprep.subr.bf16.mxu0 0
        %953 = vmatpush1.bf16.msra.mxu0 0
        %954 = vmatprep.subr.bf16.mxu0 0
        %955 = vmatpush1.bf16.msra.mxu0 0
        %956 = vmatprep.subr.bf16.mxu0 0
        %957 = vmatpush1.bf16.msra.mxu0 0
        %958 = vmatprep.subr.bf16.mxu0 0
        %959 = vmatpush1.bf16.msra.mxu0 0
        %960 = vmatprep.subr.bf16.mxu0 0
        %961 = vmatpush1.bf16.msra.mxu0 0
        %962 = vmatprep.subr.bf16.mxu0 0
        %963 = vmatpush1.bf16.msra.mxu0 0
        %964 = vmatprep.subr.bf16.mxu0 0
        %965 = vmatpush1.bf16.msra.mxu0 0
        %966 = vmatprep.mubr.bf16.mxu0 0
        %967 = vmatmul.mubr.bf16.gmra.mrb[0].mxu0 %v929
        %v968 = vpop.f32.mrb[0].mxu0
        %v969 = vadd.f32 0.0, %v968
        %v970 = vpop.f32.mrb[0].mxu0
        %v971 = vpop.f32.mrb[0].mxu0
        %v972 = vpop.f32.mrb[0].mxu0
        %973 = vdwg.mxu0
        %v974 = vpack.c.bf16 %v969, %v969
        %v976 = vunpack.c.l.b16 %v974
        %v977 = vpack.c.b16 %v976, %v976
        %978 = vrot.lane.b32.xlu0 %v977, 8
        %v979 = vpop.permute.xlu0 %978
        %vm981 = vcmask 126016
        %982 = vst.msk [vmem:[#allocation4] sm:$0xf] %vm981, %v979
        %983 = vrot.lane.b32.xlu0 %v745, 112
        %v984 = vpop.permute.xlu0 %983
        %985 = vrot.lane.b32.xlu0 %v862, 112
        %v986 = vpop.permute.xlu0 %985
        %v988 = vsel %vm748, %v984, 0
        %v991 = vsel %vm748, %v986, 0
        %993 = vmatprep.subr.bf16.mxu0 0
        %994 = vmatpush1.bf16.xpose.msra.mxu0 %v991
        %995 = vmatprep.subr.bf16.mxu0 0
        %996 = vmatpush1.bf16.xpose.msra.mxu0 0
        %997 = vmatprep.subr.bf16.mxu0 0
        %998 = vmatpush1.bf16.xpose.msra.mxu0 0
        %999 = vmatprep.subr.bf16.mxu0 0
        %1000 = vmatpush1.bf16.xpose.msra.mxu0 0
        %1001 = vmatprep.subr.bf16.mxu0 0
        %1002 = vmatpush1.bf16.xpose.msra.mxu0 0
        %1003 = vmatprep.subr.bf16.mxu0 0
        %1004 = vmatpush1.bf16.xpose.msra.mxu0 0
        %1005 = vmatprep.subr.bf16.mxu0 0
        %1006 = vmatpush1.bf16.xpose.msra.mxu0 0
        %1007 = vmatprep.subr.bf16.mxu0 0
        %1008 = vmatpush1.bf16.xpose.msra.mxu0 0
        %1009 = vmatprep.subr.bf16.mxu0 0
        %1010 = vmatpush1.bf16.xpose.msra.mxu0 0
        %1011 = vmatprep.subr.bf16.mxu0 0
        %1012 = vmatpush1.bf16.xpose.msra.mxu0 0
        %1013 = vmatprep.subr.bf16.mxu0 0
        %1014 = vmatpush1.bf16.xpose.msra.mxu0 0
        %1015 = vmatprep.subr.bf16.mxu0 0
        %1016 = vmatpush1.bf16.xpose.msra.mxu0 0
        %1017 = vmatprep.subr.bf16.mxu0 0
        %1018 = vmatpush1.bf16.xpose.msra.mxu0 0
        %1019 = vmatprep.subr.bf16.mxu0 0
        %1020 = vmatpush1.bf16.xpose.msra.mxu0 0
        %1021 = vmatprep.subr.bf16.mxu0 0
        %1022 = vmatpush1.bf16.xpose.msra.mxu0 0
        %1023 = vmatprep.subr.bf16.mxu0 0
        %1024 = vmatpush1.bf16.xpose.msra.mxu0 0
        %1025 = vmatprep.mubr.bf16.mxu0 0
        %1026 = vmatmul.mubr.bf16.gmra.mrb[0].mxu0 %v988
        %v1027 = vpop.f32.mrb[0].mxu0
        %v1028 = vadd.f32 0.0, %v1027
        %v1029 = vpop.f32.mrb[0].mxu0
        %v1030 = vpop.f32.mrb[0].mxu0
        %v1031 = vpop.f32.mrb[0].mxu0
        %1032 = vdwg.mxu0
        %v1033 = vsel %vm748, %v1028, -inf
        %1034 = vmax.xlane.f32.xlu0 %v1033
        %v1035 = vpop.xlane.xlu0 %1034
        %v1036 = vsub.f32 %v1028, %v1035
        %v1037 = vmul.f32 %v1036, 1.442695
        %v1038 = vpow.pop %v1037
        %v1039 = vsel %vm748, %v1038, 0.0
        %1040 = vadd.xlane.f32.xlu0 %v1039
        %v1041 = vpop.xlane.xlu0 %1040
        %v1042 = vrcp.pop %v1041
        %v1043 = vmul.f32 %v1038, %v1042
        %v1044 = vpack.c.bf16 %v1043, %v1043
        %1045 = vrot.lane.b32.xlu0 %v925, 112
        %v1046 = vpop.permute.xlu0 %1045
        %v1048 = vsel %vm748, %v1044, 0
        %v1051 = vsel %vm810, %v1046, 0
        %1053 = vmatprep.subr.bf16.mxu0 0
        %1054 = vmatpush1.bf16.msra.mxu0 %v1051
        %1055 = vmatprep.subr.bf16.mxu0 0
        %1056 = vmatpush1.bf16.msra.mxu0 0
        %1057 = vmatprep.subr.bf16.mxu0 0
        %1058 = vmatpush1.bf16.msra.mxu0 0
        %1059 = vmatprep.subr.bf16.mxu0 0
        %1060 = vmatpush1.bf16.msra.mxu0 0
        %1061 = vmatprep.subr.bf16.mxu0 0
        %1062 = vmatpush1.bf16.msra.mxu0 0
        %1063 = vmatprep.subr.bf16.mxu0 0
        %1064 = vmatpush1.bf16.msra.mxu0 0
        %1065 = vmatprep.subr.bf16.mxu0 0
        %1066 = vmatpush1.bf16.msra.mxu0 0
        %1067 = vmatprep.subr.bf16.mxu0 0
        %1068 = vmatpush1.bf16.msra.mxu0 0
        %1069 = vmatprep.subr.bf16.mxu0 0
        %1070 = vmatpush1.bf16.msra.mxu0 0
        %1071 = vmatprep.subr.bf16.mxu0 0
        %1072 = vmatpush1.bf16.msra.mxu0 0
        %1073 = vmatprep.subr.bf16.mxu0 0
        %1074 = vmatpush1.bf16.msra.mxu0 0
        %1075 = vmatprep.subr.bf16.mxu0 0
        %1076 = vmatpush1.bf16.msra.mxu0 0
        %1077 = vmatprep.subr.bf16.mxu0 0
        %1078 = vmatpush1.bf16.msra.mxu0 0
        %1079 = vmatprep.subr.bf16.mxu0 0
        %1080 = vmatpush1.bf16.msra.mxu0 0
        %1081 = vmatprep.subr.bf16.mxu0 0
        %1082 = vmatpush1.bf16.msra.mxu0 0
        %1083 = vmatprep.subr.bf16.mxu0 0
        %1084 = vmatpush1.bf16.msra.mxu0 0
        %1085 = vmatprep.mubr.bf16.mxu0 0
        %1086 = vmatmul.mubr.bf16.gmra.mrb[0].mxu0 %v1048
        %v1087 = vpop.f32.mrb[0].mxu0
        %v1088 = vadd.f32 0.0, %v1087
        %v1089 = vpop.f32.mrb[0].mxu0
        %v1090 = vpop.f32.mrb[0].mxu0
        %v1091 = vpop.f32.mrb[0].mxu0
        %1092 = vdwg.mxu0
        %v1093 = vpack.c.bf16 %v1088, %v1088
        %v1095 = vunpack.c.l.b16 %v1093
        %v1096 = vpack.c.b16 %v1095, %v1095
        %1097 = vrot.lane.b32.xlu0 %v1096, 16
        %v1098 = vpop.permute.xlu0 %1097
        %vm1100 = vcmask 191616
        %1101 = vst.msk [vmem:[#allocation4] sm:$0xf] %vm1100, %v1098
        %1102 = vrot.lane.b32.xlu0 %v745, 104
        %v1103 = vpop.permute.xlu0 %1102
        %1104 = vrot.lane.b32.xlu0 %v862, 104
        %v1105 = vpop.permute.xlu0 %1104
        %v1107 = vsel %vm748, %v1103, 0
        %v1110 = vsel %vm748, %v1105, 0
        %1112 = vmatprep.subr.bf16.mxu0 0
        %1113 = vmatpush1.bf16.xpose.msra.mxu0 %v1110
        %1114 = vmatprep.subr.bf16.mxu0 0
        %1115 = vmatpush1.bf16.xpose.msra.mxu0 0
        %1116 = vmatprep.subr.bf16.mxu0 0
        %1117 = vmatpush1.bf16.xpose.msra.mxu0 0
        %1118 = vmatprep.subr.bf16.mxu0 0
        %1119 = vmatpush1.bf16.xpose.msra.mxu0 0
        %1120 = vmatprep.subr.bf16.mxu0 0
        %1121 = vmatpush1.bf16.xpose.msra.mxu0 0
        %1122 = vmatprep.subr.bf16.mxu0 0
        %1123 = vmatpush1.bf16.xpose.msra.mxu0 0
        %1124 = vmatprep.subr.bf16.mxu0 0
        %1125 = vmatpush1.bf16.xpose.msra.mxu0 0
        %1126 = vmatprep.subr.bf16.mxu0 0
        %1127 = vmatpush1.bf16.xpose.msra.mxu0 0
        %1128 = vmatprep.subr.bf16.mxu0 0
        %1129 = vmatpush1.bf16.xpose.msra.mxu0 0
        %1130 = vmatprep.subr.bf16.mxu0 0
        %1131 = vmatpush1.bf16.xpose.msra.mxu0 0
        %1132 = vmatprep.subr.bf16.mxu0 0
        %1133 = vmatpush1.bf16.xpose.msra.mxu0 0
        %1134 = vmatprep.subr.bf16.mxu0 0
        %1135 = vmatpush1.bf16.xpose.msra.mxu0 0
        %1136 = vmatprep.subr.bf16.mxu0 0
        %1137 = vmatpush1.bf16.xpose.msra.mxu0 0
        %1138 = vmatprep.subr.bf16.mxu0 0
        %1139 = vmatpush1.bf16.xpose.msra.mxu0 0
        %1140 = vmatprep.subr.bf16.mxu0 0
        %1141 = vmatpush1.bf16.xpose.msra.mxu0 0
        %1142 = vmatprep.subr.bf16.mxu0 0
        %1143 = vmatpush1.bf16.xpose.msra.mxu0 0
        %1144 = vmatprep.mubr.bf16.mxu0 0
        %1145 = vmatmul.mubr.bf16.gmra.mrb[0].mxu0 %v1107
        %v1146 = vpop.f32.mrb[0].mxu0
        %v1147 = vadd.f32 0.0, %v1146
        %v1148 = vpop.f32.mrb[0].mxu0
        %v1149 = vpop.f32.mrb[0].mxu0
        %v1150 = vpop.f32.mrb[0].mxu0
        %1151 = vdwg.mxu0
        %v1152 = vsel %vm748, %v1147, -inf
        %1153 = vmax.xlane.f32.xlu0 %v1152
        %v1154 = vpop.xlane.xlu0 %1153
        %v1155 = vsub.f32 %v1147, %v1154
        %v1156 = vmul.f32 %v1155, 1.442695
        %v1157 = vpow.pop %v1156
        %v1158 = vsel %vm748, %v1157, 0.0
        %1159 = vadd.xlane.f32.xlu0 %v1158
        %v1160 = vpop.xlane.xlu0 %1159
        %v1161 = vrcp.pop %v1160
        %v1162 = vmul.f32 %v1157, %v1161
        %v1163 = vpack.c.bf16 %v1162, %v1162
        %1164 = vrot.lane.b32.xlu0 %v925, 104
        %v1165 = vpop.permute.xlu0 %1164
        %v1167 = vsel %vm748, %v1163, 0
        %v1170 = vsel %vm810, %v1165, 0
        %1172 = vmatprep.subr.bf16.mxu0 0
        %1173 = vmatpush1.bf16.msra.mxu0 %v1170
        %1174 = vmatprep.subr.bf16.mxu0 0
        %1175 = vmatpush1.bf16.msra.mxu0 0
        %1176 = vmatprep.subr.bf16.mxu0 0
        %1177 = vmatpush1.bf16.msra.mxu0 0
        %1178 = vmatprep.subr.bf16.mxu0 0
        %1179 = vmatpush1.bf16.msra.mxu0 0
        %1180 = vmatprep.subr.bf16.mxu0 0
        %1181 = vmatpush1.bf16.msra.mxu0 0
        %1182 = vmatprep.subr.bf16.mxu0 0
        %1183 = vmatpush1.bf16.msra.mxu0 0
        %1184 = vmatprep.subr.bf16.mxu0 0
        %1185 = vmatpush1.bf16.msra.mxu0 0
        %1186 = vmatprep.subr.bf16.mxu0 0
        %1187 = vmatpush1.bf16.msra.mxu0 0
        %1188 = vmatprep.subr.bf16.mxu0 0
        %1189 = vmatpush1.bf16.msra.mxu0 0
        %1190 = vmatprep.subr.bf16.mxu0 0
        %1191 = vmatpush1.bf16.msra.mxu0 0
        %1192 = vmatprep.subr.bf16.mxu0 0
        %1193 = vmatpush1.bf16.msra.mxu0 0
        %1194 = vmatprep.subr.bf16.mxu0 0
        %1195 = vmatpush1.bf16.msra.mxu0 0
        %1196 = vmatprep.subr.bf16.mxu0 0
        %1197 = vmatpush1.bf16.msra.mxu0 0
        %1198 = vmatprep.subr.bf16.mxu0 0
        %1199 = vmatpush1.bf16.msra.mxu0 0
        %1200 = vmatprep.subr.bf16.mxu0 0
        %1201 = vmatpush1.bf16.msra.mxu0 0
        %1202 = vmatprep.subr.bf16.mxu0 0
        %1203 = vmatpush1.bf16.msra.mxu0 0
        %1204 = vmatprep.mubr.bf16.mxu0 0
        %1205 = vmatmul.mubr.bf16.gmra.mrb[0].mxu0 %v1167
        %v1206 = vpop.f32.mrb[0].mxu0
        %v1207 = vadd.f32 0.0, %v1206
        %v1208 = vpop.f32.mrb[0].mxu0
        %v1209 = vpop.f32.mrb[0].mxu0
        %v1210 = vpop.f32.mrb[0].mxu0
        %1211 = vdwg.mxu0
        %v1212 = vpack.c.bf16 %v1207, %v1207
        %v1214 = vunpack.c.l.b16 %v1212
        %v1215 = vpack.c.b16 %v1214, %v1214
        %1216 = vrot.lane.b32.xlu0 %v1215, 24
        %v1217 = vpop.permute.xlu0 %1216
        %vm1219 = vcmask 257216
        %1220 = vst.msk [vmem:[#allocation4] sm:$0xf] %vm1219, %v1217
        %v1221 = vld [vmem:[#allocation4] sm:$0xf]
        %v1222 = vld [vmem:[%s9] sm:$0xf]
        %v1223 = vld [vmem:[%s9 + $0x4] sm:$0xf]
        %v1224 = vld [vmem:[%s9 + $0x8] sm:$0xf]
        %v1225 = vld [vmem:[%s9 + $0xc] sm:$0xf]
        %v1226 = vld [vmem:[%s10] sm:$0x1]
        %v1228 = vlaneseq
        %v1229 = vshrl.u32 %v1228, 7
        %v1230 = vsub.s32 0, %v1229
        %v1231 = vrot.slane %v1226, %v1230
        %v1237 = vunpack.c.l.b16 %v1222
        %v1238 = vunpack.c.l.b16 %v1223
        %v1239 = vunpack.c.l.b16 %v1224
        %v1240 = vunpack.c.l.b16 %v1225
        %v1241 = vpack.c.b16 %v1238, %v1237
        %v1242 = vpack.c.b16 %v1240, %v1239
        %v1246 = vsel %vm701, %v1221, 0
        %1248 = vmatprep.subr.bf16.mxu0 0
        %1249 = vmatpush1.bf16.msra.mxu0 %v1241
        %1250 = vmatprep.subr.bf16.mxu0 0
        %1251 = vmatpush1.bf16.msra.mxu0 %v1242
        %1252 = vmatprep.subr.bf16.mxu0 0
        %1253 = vmatpush1.bf16.msra.mxu0 0
        %1254 = vmatprep.subr.bf16.mxu0 0
        %1255 = vmatpush1.bf16.msra.mxu0 0
        %1256 = vmatprep.subr.bf16.mxu0 0
        %1257 = vmatpush1.bf16.msra.mxu0 0
        %1258 = vmatprep.subr.bf16.mxu0 0
        %1259 = vmatpush1.bf16.msra.mxu0 0
        %1260 = vmatprep.subr.bf16.mxu0 0
        %1261 = vmatpush1.bf16.msra.mxu0 0
        %1262 = vmatprep.subr.bf16.mxu0 0
        %1263 = vmatpush1.bf16.msra.mxu0 0
        %1264 = vmatprep.subr.bf16.mxu0 0
        %1265 = vmatpush1.bf16.msra.mxu0 0
        %1266 = vmatprep.subr.bf16.mxu0 0
        %1267 = vmatpush1.bf16.msra.mxu0 0
        %1268 = vmatprep.subr.bf16.mxu0 0
        %1269 = vmatpush1.bf16.msra.mxu0 0
        %1270 = vmatprep.subr.bf16.mxu0 0
        %1271 = vmatpush1.bf16.msra.mxu0 0
        %1272 = vmatprep.subr.bf16.mxu0 0
        %1273 = vmatpush1.bf16.msra.mxu0 0
        %1274 = vmatprep.subr.bf16.mxu0 0
        %1275 = vmatpush1.bf16.msra.mxu0 0
        %1276 = vmatprep.subr.bf16.mxu0 0
        %1277 = vmatpush1.bf16.msra.mxu0 0
        %1278 = vmatprep.subr.bf16.mxu0 0
        %1279 = vmatpush1.bf16.msra.mxu0 0
        %1280 = vmatprep.mubr.bf16.mxu0 0
        %1281 = vmatmul.mubr.bf16.gmra.mrb[0].mxu0 %v1246
        %v1282 = vpop.f32.mrb[0].mxu0
        %v1283 = vadd.f32 %v1231, %v1282
        %v1284 = vpop.f32.mrb[0].mxu0
        %v1285 = vpop.f32.mrb[0].mxu0
        %v1286 = vpop.f32.mrb[0].mxu0
        %1287 = vdwg.mxu0
        %1288 = vst.msk [vmem:[%s531] sm:$0xff] %vm701, %v1283
        %s1289 = sand.u32 %s303, 1
        %s1290 = scalar_lea.sflag [#allocation7], %s1289
        %s1291 = sand.u32 %s303, 1
        %s1292 = smul.addr %s1291, 8
        %s1293 = scalar_lea.vmem [#allocation16], %s1292
        // Predicated region
        $region93: #{tpu_custom_call.1} parent=63 // pred_check
          %p1294 = pneg %p313
        $region94: #{tpu_custom_call.1} parent=63 // pred_check_branch
          %1296 = sbr.rel (%p1294) target = $region96
        $region95: #{tpu_custom_call.1} parent=63 // pred_region
          %s1298 = ssub.s32 128, 128
          %1299 = vsyncadd %s1290, %s1298
          %s1300 = sadd.s32 %s38, %s37
          %s1301 = smul.addr %s1300, 128
          %s1302 = scalar_lea.hbm %s11, %s1301
          %s1304 = sshll.u32 %s1293, 4
          %s1305 = int_to_ptr.vmem [resolvable:$true] %s1304
          %1307 = dma.vmem_to_hbm [thread:$0]  %s1305, 128, %s1302, %s1290
        $region96: #{tpu_custom_call.1} parent=63 // pred_fallthru
          _
      $region64: #{tpu_custom_call.1} parent=5 // pred_fallthru
        _
      %p1308 = scmp.le.s32.totalorder 2, %s28
      // Predicated region
      $region97: #{tpu_custom_call.1} parent=5 // pred_check
        %p1309 = pneg %p1308
      $region98: #{tpu_custom_call.1} parent=5 // pred_check_branch
        %1311 = sbr.rel (%p1309) target = $region100
      $region99: #{tpu_custom_call.1} parent=5 // pred_region
        %s1312 = ssub.s32 %s28, 2
        // Predicated region
        $region101: #{tpu_custom_call.1} parent=99 // pred_check
          %p1313 = pneg %p319
        $region102: #{tpu_custom_call.1} parent=99 // pred_check_branch
          %1315 = sbr.rel (%p1313) target = $region104
        $region103: #{tpu_custom_call.1} parent=99 // pred_region
          %s1316 = sand.u32 %s304, 1
          %s1317 = scalar_lea.sflag [#allocation7], %s1316
          %s1318 = sand.u32 %s304, 1
          %s1319 = smul.addr %s1318, 8
          %s1320 = scalar_lea.vmem [#allocation16], %s1319
          %1321 = dma.done %s1317, 128
        $region104: #{tpu_custom_call.1} parent=99 // pred_fallthru
          _
      $region100: #{tpu_custom_call.1} parent=5 // pred_fallthru
        _
    $region6: #{tpu_custom_call.1} parent=1 // loop_footer
      %s32 = sadd.s32 1, %s28
    $region7: #{tpu_custom_call.1} parent=1 // loop_footer_branch
      %27 = sbr.rel target = $region3
    $region8: #{tpu_custom_call.1} parent=1 // loop_exit
      _
    %1322 = vsyncpa [#allocation6], 1
    %s1323 = scalar_lea.sflag [#allocation6], 1
    %1324 = vsyncpa %s1323, 1
    %1325 = vsyncpa [#allocation9], 1
    %s1326 = scalar_lea.sflag [#allocation9], 1
    %1327 = vsyncpa %s1326, 1
    %1328 = vsyncpa [#allocation12], 1
    %1329 = vsyncpa [#allocation15], 1
    %1330 = vsyncpa [#allocation7], 1
    %s1331 = scalar_lea.sflag [#allocation7], 1
    %1332 = vsyncpa %s1331, 1

</llo_original>
